<compile_context>
chip_gen: v7x
topology: tpu7x:2x2x1
jax: 0.10.0
libtpu: 0.0.40
codegen_flags: <defaults>
</compile_context>

<pallas_src>
import functools

import jax
import jax.numpy as jnp
from jax.experimental import pallas as pl
from jax.experimental.pallas import tpu as pltpu

_BN_EPS = 1e-5


# ---------------------------------------------------------------------------
# In-kernel building blocks (shared by both entry points).
# ---------------------------------------------------------------------------
def _linear_bn_relu(h_bf16, w_ref, b_ref, g_ref, beta_ref, mu_ref, var_ref):
    """relu(bn(h @ W + b)) with eval-mode BN; returns bf16 for the next MXU op."""
    y = jnp.dot(h_bf16, w_ref[...], preferred_element_type=jnp.float32)   # MXU
    y = y + b_ref[...]                                                    # (1, N) broadcast
    inv = jax.lax.rsqrt(var_ref[...] + _BN_EPS)                           # EUP
    y = (y - mu_ref[...]) * (g_ref[...] * inv) + beta_ref[...]            # VPU
    return jnp.maximum(y, 0.0).astype(jnp.bfloat16)


def _head_math(x_ref,
               w1_ref, b1_ref, g1_ref, be1_ref, m1_ref, v1_ref,
               w2_ref, b2_ref, g2_ref, be2_ref, m2_ref, v2_ref,
               w3_ref, b3_ref):
    h = _linear_bn_relu(x_ref[...], w1_ref, b1_ref, g1_ref, be1_ref, m1_ref, v1_ref)
    h = _linear_bn_relu(h, w2_ref, b2_ref, g2_ref, be2_ref, m2_ref, v2_ref)
    z = jnp.dot(h, w3_ref[...], preferred_element_type=jnp.float32) + b3_ref[...]  # (B, C)
    m = jnp.max(z, axis=-1, keepdims=True)                                # XLU lane reduce
    lse = jnp.log(jnp.sum(jnp.exp(z - m), axis=-1, keepdims=True)) + m
    return z - lse                                                        # f32 log-probs


def _cls_head_kernel(*refs):
    *in_refs, logp_ref = refs
    logp_ref[...] = _head_math(*in_refs).astype(logp_ref.dtype)


def _cls_head_loss_kernel(*refs, inv_n):
    *in_refs, tgt_ref, logp_ref, loss_ref = refs
    logp = _head_math(*in_refs)
    logp_ref[...] = logp.astype(logp_ref.dtype)
    b, c = logp.shape
    col_ids = jax.lax.broadcasted_iota(jnp.int32, (b, c), dimension=1)
    picked = jnp.where(col_ids == tgt_ref[...], logp, 0.0)                # (B, C)
    loss_ref[0, 0] = -jnp.sum(picked) * jnp.float32(inv_n)


# ---------------------------------------------------------------------------
# Wrappers (single-block pallas_calls; no wrapper-side pad/transpose/cast).
# ---------------------------------------------------------------------------
def _full_block(shape):
    zeros = (0,) * len(shape)
    return pl.BlockSpec(tuple(shape), lambda i, _z=zeros: _z)


def _head_operands(params):
    row = lambda a: jnp.asarray(a, jnp.float32).reshape(1, -1)   # tiny (1, N) rows only
    return (
        params["fc1_w"], row(params["fc1_b"]),
        row(params["bn1_gamma"]), row(params["bn1_beta"]),
        row(params["bn1_mean"]), row(params["bn1_var"]),
        params["fc2_w"], row(params["fc2_b"]),
        row(params["bn2_gamma"]), row(params["bn2_beta"]),
        row(params["bn2_mean"]), row(params["bn2_var"]),
        params["fc3_w"], row(params["fc3_b"]),
    )


def pointnet2_cls_head(l3_points, params):
    """Forward of the classifier head: returns (log_probs, l3_points) like the module."""
    B, _ = l3_points.shape
    C = params["fc3_w"].shape[1]
    ops = (l3_points,) + _head_operands(params)
    logp = pl.pallas_call(
        _cls_head_kernel,
        out_shape=jax.ShapeDtypeStruct((B, C), jnp.float32),
        grid=(1,),
        in_specs=[_full_block(o.shape) for o in ops],
        out_specs=_full_block((B, C)),
        compiler_params=pltpu.CompilerParams(dimension_semantics=("arbitrary",)),
    )(*ops)
    return logp, l3_points


def pointnet2_cls_head_with_loss(l3_points, target, params):
    """Same forward, plus the mean-NLL loss, fused into one pallas_call (two outputs)."""
    B, _ = l3_points.shape
    C = params["fc3_w"].shape[1]
    tgt = target.astype(jnp.int32).reshape(B, 1)
    ops = (l3_points,) + _head_operands(params) + (tgt,)
    logp, loss = pl.pallas_call(
        functools.partial(_cls_head_loss_kernel, inv_n=1.0 / B),
        out_shape=(jax.ShapeDtypeStruct((B, C), jnp.float32),
                   jax.ShapeDtypeStruct((1, 1), jnp.float32)),
        grid=(1,),
        in_specs=[_full_block(o.shape) for o in ops],
        out_specs=(_full_block((B, C)), _full_block((1, 1))),
        compiler_params=pltpu.CompilerParams(dimension_semantics=("arbitrary",)),
    )(*ops)
    return logp, loss[0, 0]


# ---------------------------------------------------------------------------
# Pure-JAX reference (identical math / dtypes) for correctness checking.
# ---------------------------------------------------------------------------
def _ref_forward(x, p):
    def lbr(h, w, b, g, beta, mu, var):
        y = jnp.dot(h, w, preferred_element_type=jnp.float32) + b
        y = (y - mu) * (g * jax.lax.rsqrt(var + _BN_EPS)) + beta
        return jnp.maximum(y, 0.0).astype(jnp.bfloat16)

    h = lbr(x, p["fc1_w"], p["fc1_b"], p["bn1_gamma"], p["bn1_beta"],
            p["bn1_mean"], p["bn1_var"])
    h = lbr(h, p["fc2_w"], p["fc2_b"], p["bn2_gamma"], p["bn2_beta"],
            p["bn2_mean"], p["bn2_var"])
    z = jnp.dot(h, p["fc3_w"], preferred_element_type=jnp.float32) + p["fc3_b"]
    return jax.nn.log_softmax(z, axis=-1)


if __name__ == "__main__":
    key = jax.random.PRNGKey(0)
    ks = jax.random.split(key, 16)

    B, C = 8, 16                    # batch, num_class (small demo shapes)
    D1, D2, D3 = 1024, 512, 256     # head widths fixed by the module

    def w_init(k, fi, fo):
        return (jax.random.normal(k, (fi, fo), jnp.float32)
                * (1.0 / jnp.sqrt(fi))).astype(jnp.bfloat16)

    params = {
        "fc1_w": w_init(ks[0], D1, D2),
        "fc1_b": 0.1 * jax.random.normal(ks[1], (D2,), jnp.float32),
        "bn1_gamma": 1.0 + 0.1 * jax.random.normal(ks[2], (D2,), jnp.float32),
        "bn1_beta": 0.1 * jax.random.normal(ks[3], (D2,), jnp.float32),
        "bn1_mean": 0.1 * jax.random.normal(ks[4], (D2,), jnp.float32),
        "bn1_var": jax.random.uniform(ks[5], (D2,), jnp.float32, 0.5, 1.5),
        "fc2_w": w_init(ks[6], D2, D3),
        "fc2_b": 0.1 * jax.random.normal(ks[7], (D3,), jnp.float32),
        "bn2_gamma": 1.0 + 0.1 * jax.random.normal(ks[8], (D3,), jnp.float32),
        "bn2_beta": 0.1 * jax.random.normal(ks[9], (D3,), jnp.float32),
        "bn2_mean": 0.1 * jax.random.normal(ks[10], (D3,), jnp.float32),
        "bn2_var": jax.random.uniform(ks[11], (D3,), jnp.float32, 0.5, 1.5),
        "fc3_w": w_init(ks[12], D3, C),
        "fc3_b": 0.1 * jax.random.normal(ks[13], (C,), jnp.float32),
    }

    # TODO(synk): sa1/sa2/sa3 outputs are stand-ins (set-abstraction not implemented).
    l3_points = jax.random.normal(ks[14], (B, D1), jnp.float32).astype(jnp.bfloat16)
    target = jax.random.randint(ks[15], (B,), 0, C, dtype=jnp.int32)

    # Module forward: (log_probs, l3_points).
    logp, feats = pointnet2_cls_head(l3_points, params)
    logp = jax.block_until_ready(logp)
    assert feats.shape == (B, D1)

    logp_ref = _ref_forward(l3_points, params)
    assert jnp.allclose(logp, logp_ref, atol=2e-2, rtol=2e-2), (
        float(jnp.max(jnp.abs(logp - logp_ref))))
    assert jnp.allclose(jnp.sum(jnp.exp(logp), axis=-1), 1.0, atol=1e-3)

    # Fused forward + mean-NLL loss in a single pallas_call (two outputs).
    logp2, loss = pointnet2_cls_head_with_loss(l3_points, target, params)
    loss = jax.block_until_ready(loss)
    loss_ref = -jnp.mean(logp_ref[jnp.arange(B), target])
    assert jnp.allclose(loss, loss_ref, atol=2e-2, rtol=2e-2), (float(loss), float(loss_ref))
    assert jnp.allclose(logp2, logp, atol=1e-4, rtol=1e-4)

    print("KERNEL_OK")
</pallas_src>

<mosaic_0001>
module attributes {stable_mosaic.version = 11 : i64} {
  func.func @_cls_head_kernel(%arg0: i32, %arg1: memref<8x1024xbf16, #tpu.memory_space<vmem>>, %arg2: memref<1024x512xbf16, #tpu.memory_space<vmem>>, %arg3: memref<1x512xf32, #tpu.memory_space<vmem>>, %arg4: memref<1x512xf32, #tpu.memory_space<vmem>>, %arg5: memref<1x512xf32, #tpu.memory_space<vmem>>, %arg6: memref<1x512xf32, #tpu.memory_space<vmem>>, %arg7: memref<1x512xf32, #tpu.memory_space<vmem>>, %arg8: memref<512x256xbf16, #tpu.memory_space<vmem>>, %arg9: memref<1x256xf32, #tpu.memory_space<vmem>>, %arg10: memref<1x256xf32, #tpu.memory_space<vmem>>, %arg11: memref<1x256xf32, #tpu.memory_space<vmem>>, %arg12: memref<1x256xf32, #tpu.memory_space<vmem>>, %arg13: memref<1x256xf32, #tpu.memory_space<vmem>>, %arg14: memref<256x16xbf16, #tpu.memory_space<vmem>>, %arg15: memref<1x16xf32, #tpu.memory_space<vmem>>, %arg16: memref<8x16xf32, #tpu.memory_space<vmem>>) attributes {dimension_semantics = [#tpu.dimension_semantics<arbitrary>], iteration_bounds = array<i64: 1>, scalar_prefetch = 0 : i64, scratch_operands = 0 : i64, tpu.core_type = #tpu.core_type<tc>, window_params = [{pipeline_mode = #tpu.pipeline_mode<synchronous>, transform_indices = @transform_0, window_bounds = array<i64: 8, 1024>}, {pipeline_mode = #tpu.pipeline_mode<synchronous>, transform_indices = @transform_1, window_bounds = array<i64: 1024, 512>}, {pipeline_mode = #tpu.pipeline_mode<synchronous>, transform_indices = @transform_2, window_bounds = array<i64: 1, 512>}, {pipeline_mode = #tpu.pipeline_mode<synchronous>, transform_indices = @transform_3, window_bounds = array<i64: 1, 512>}, {pipeline_mode = #tpu.pipeline_mode<synchronous>, transform_indices = @transform_4, window_bounds = array<i64: 1, 512>}, {pipeline_mode = #tpu.pipeline_mode<synchronous>, transform_indices = @transform_5, window_bounds = array<i64: 1, 512>}, {pipeline_mode = #tpu.pipeline_mode<synchronous>, transform_indices = @transform_6, window_bounds = array<i64: 1, 512>}, {pipeline_mode = #tpu.pipeline_mode<synchronous>, transform_indices = @transform_7, window_bounds = array<i64: 512, 256>}, {pipeline_mode = #tpu.pipeline_mode<synchronous>, transform_indices = @transform_8, window_bounds = array<i64: 1, 256>}, {pipeline_mode = #tpu.pipeline_mode<synchronous>, transform_indices = @transform_9, window_bounds = array<i64: 1, 256>}, {pipeline_mode = #tpu.pipeline_mode<synchronous>, transform_indices = @transform_10, window_bounds = array<i64: 1, 256>}, {pipeline_mode = #tpu.pipeline_mode<synchronous>, transform_indices = @transform_11, window_bounds = array<i64: 1, 256>}, {pipeline_mode = #tpu.pipeline_mode<synchronous>, transform_indices = @transform_12, window_bounds = array<i64: 1, 256>}, {pipeline_mode = #tpu.pipeline_mode<synchronous>, transform_indices = @transform_13, window_bounds = array<i64: 256, 16>}, {pipeline_mode = #tpu.pipeline_mode<synchronous>, transform_indices = @transform_14, window_bounds = array<i64: 1, 16>}, {pipeline_mode = #tpu.pipeline_mode<synchronous>, transform_indices = @transform_15, window_bounds = array<i64: 8, 16>}]} {
    %c0 = arith.constant 0 : index
    %c0_0 = arith.constant 0 : index
    %0 = vector.load %arg1[%c0, %c0_0] : memref<8x1024xbf16, #tpu.memory_space<vmem>>, vector<8x1024xbf16>
    %c0_1 = arith.constant 0 : index
    %c0_2 = arith.constant 0 : index
    %1 = vector.load %arg2[%c0_1, %c0_2] : memref<1024x512xbf16, #tpu.memory_space<vmem>>, vector<1024x512xbf16>
    %cst = arith.constant dense<0.000000e+00> : vector<8x512xf32>
    %2 = tpu.matmul %0, %1, %cst {dimension_numbers = #tpu.dot_dimension_numbers<[1], [0], [0], [1], [0, 0, 1, 1], [], []>} : vector<8x1024xbf16>, vector<1024x512xbf16>, vector<8x512xf32> -> vector<8x512xf32>
    %c0_3 = arith.constant 0 : index
    %c0_4 = arith.constant 0 : index
    %3 = vector.load %arg3[%c0_3, %c0_4] : memref<1x512xf32, #tpu.memory_space<vmem>>, vector<1x512xf32>
    %4 = vector.broadcast %3 : vector<1x512xf32> to vector<8x512xf32>
    %5 = arith.addf %2, %4 : vector<8x512xf32>
    %c0_5 = arith.constant 0 : index
    %c0_6 = arith.constant 0 : index
    %6 = vector.load %arg7[%c0_5, %c0_6] : memref<1x512xf32, #tpu.memory_space<vmem>>, vector<1x512xf32>
    %cst_7 = arith.constant 9.99999974E-6 : f32
    %7 = vector.broadcast %cst_7 : f32 to vector<1x512xf32>
    %8 = arith.addf %6, %7 : vector<1x512xf32>
    %9 = math.rsqrt %8 : vector<1x512xf32>
    %c0_8 = arith.constant 0 : index
    %c0_9 = arith.constant 0 : index
    %10 = vector.load %arg6[%c0_8, %c0_9] : memref<1x512xf32, #tpu.memory_space<vmem>>, vector<1x512xf32>
    %11 = vector.broadcast %10 : vector<1x512xf32> to vector<8x512xf32>
    %12 = arith.subf %5, %11 : vector<8x512xf32>
    %c0_10 = arith.constant 0 : index
    %c0_11 = arith.constant 0 : index
    %13 = vector.load %arg4[%c0_10, %c0_11] : memref<1x512xf32, #tpu.memory_space<vmem>>, vector<1x512xf32>
    %14 = arith.mulf %13, %9 : vector<1x512xf32>
    %15 = vector.broadcast %14 : vector<1x512xf32> to vector<8x512xf32>
    %16 = arith.mulf %12, %15 : vector<8x512xf32>
    %c0_12 = arith.constant 0 : index
    %c0_13 = arith.constant 0 : index
    %17 = vector.load %arg5[%c0_12, %c0_13] : memref<1x512xf32, #tpu.memory_space<vmem>>, vector<1x512xf32>
    %18 = vector.broadcast %17 : vector<1x512xf32> to vector<8x512xf32>
    %19 = arith.addf %16, %18 : vector<8x512xf32>
    %cst_14 = arith.constant 0.000000e+00 : f32
    %20 = vector.broadcast %cst_14 : f32 to vector<8x512xf32>
    %21 = arith.maximumf %19, %20 : vector<8x512xf32>
    %22 = arith.truncf %21 : vector<8x512xf32> to vector<8x512xbf16>
    %c0_15 = arith.constant 0 : index
    %c0_16 = arith.constant 0 : index
    %23 = vector.load %arg8[%c0_15, %c0_16] : memref<512x256xbf16, #tpu.memory_space<vmem>>, vector<512x256xbf16>
    %cst_17 = arith.constant dense<0.000000e+00> : vector<8x256xf32>
    %24 = tpu.matmul %22, %23, %cst_17 {dimension_numbers = #tpu.dot_dimension_numbers<[1], [0], [0], [1], [0, 0, 1, 1], [], []>} : vector<8x512xbf16>, vector<512x256xbf16>, vector<8x256xf32> -> vector<8x256xf32>
    %c0_18 = arith.constant 0 : index
    %c0_19 = arith.constant 0 : index
    %25 = vector.load %arg9[%c0_18, %c0_19] : memref<1x256xf32, #tpu.memory_space<vmem>>, vector<1x256xf32>
    %26 = vector.broadcast %25 : vector<1x256xf32> to vector<8x256xf32>
    %27 = arith.addf %24, %26 : vector<8x256xf32>
    %c0_20 = arith.constant 0 : index
    %c0_21 = arith.constant 0 : index
    %28 = vector.load %arg13[%c0_20, %c0_21] : memref<1x256xf32, #tpu.memory_space<vmem>>, vector<1x256xf32>
    %cst_22 = arith.constant 9.99999974E-6 : f32
    %29 = vector.broadcast %cst_22 : f32 to vector<1x256xf32>
    %30 = arith.addf %28, %29 : vector<1x256xf32>
    %31 = math.rsqrt %30 : vector<1x256xf32>
    %c0_23 = arith.constant 0 : index
    %c0_24 = arith.constant 0 : index
    %32 = vector.load %arg12[%c0_23, %c0_24] : memref<1x256xf32, #tpu.memory_space<vmem>>, vector<1x256xf32>
    %33 = vector.broadcast %32 : vector<1x256xf32> to vector<8x256xf32>
    %34 = arith.subf %27, %33 : vector<8x256xf32>
    %c0_25 = arith.constant 0 : index
    %c0_26 = arith.constant 0 : index
    %35 = vector.load %arg10[%c0_25, %c0_26] : memref<1x256xf32, #tpu.memory_space<vmem>>, vector<1x256xf32>
    %36 = arith.mulf %35, %31 : vector<1x256xf32>
    %37 = vector.broadcast %36 : vector<1x256xf32> to vector<8x256xf32>
    %38 = arith.mulf %34, %37 : vector<8x256xf32>
    %c0_27 = arith.constant 0 : index
    %c0_28 = arith.constant 0 : index
    %39 = vector.load %arg11[%c0_27, %c0_28] : memref<1x256xf32, #tpu.memory_space<vmem>>, vector<1x256xf32>
    %40 = vector.broadcast %39 : vector<1x256xf32> to vector<8x256xf32>
    %41 = arith.addf %38, %40 : vector<8x256xf32>
    %cst_29 = arith.constant 0.000000e+00 : f32
    %42 = vector.broadcast %cst_29 : f32 to vector<8x256xf32>
    %43 = arith.maximumf %41, %42 : vector<8x256xf32>
    %44 = arith.truncf %43 : vector<8x256xf32> to vector<8x256xbf16>
    %c0_30 = arith.constant 0 : index
    %c0_31 = arith.constant 0 : index
    %45 = vector.load %arg14[%c0_30, %c0_31] : memref<256x16xbf16, #tpu.memory_space<vmem>>, vector<256x16xbf16>
    %cst_32 = arith.constant dense<0.000000e+00> : vector<8x16xf32>
    %46 = tpu.matmul %44, %45, %cst_32 {dimension_numbers = #tpu.dot_dimension_numbers<[1], [0], [0], [1], [0, 0, 1, 1], [], []>} : vector<8x256xbf16>, vector<256x16xbf16>, vector<8x16xf32> -> vector<8x16xf32>
    %c0_33 = arith.constant 0 : index
    %c0_34 = arith.constant 0 : index
    %47 = vector.load %arg15[%c0_33, %c0_34] : memref<1x16xf32, #tpu.memory_space<vmem>>, vector<1x16xf32>
    %48 = vector.broadcast %47 : vector<1x16xf32> to vector<8x16xf32>
    %49 = arith.addf %46, %48 : vector<8x16xf32>
    %cst_35 = arith.constant dense<0xFF800000> : vector<8xf32>
    %50 = vector.multi_reduction <maximumf>, %49, %cst_35 [1] : vector<8x16xf32> to vector<8xf32>
    %51 = vector.shape_cast %50 : vector<8xf32> to vector<8x1xf32>
    %52 = vector.broadcast %51 : vector<8x1xf32> to vector<8x16xf32>
    %53 = arith.subf %49, %52 : vector<8x16xf32>
    %54 = math.exp %53 : vector<8x16xf32>
    %cst_36 = arith.constant dense<0.000000e+00> : vector<8xf32>
    %55 = vector.multi_reduction <add>, %54, %cst_36 [1] : vector<8x16xf32> to vector<8xf32>
    %56 = vector.shape_cast %55 : vector<8xf32> to vector<8x1xf32>
    %57 = math.log %56 : vector<8x1xf32>
    %58 = arith.addf %57, %51 : vector<8x1xf32>
    %59 = vector.broadcast %58 : vector<8x1xf32> to vector<8x16xf32>
    %60 = arith.subf %49, %59 : vector<8x16xf32>
    %c0_37 = arith.constant 0 : index
    %c0_38 = arith.constant 0 : index
    %61 = vector.load %arg16[%c0_37, %c0_38] : memref<8x16xf32, #tpu.memory_space<vmem>>, vector<8x16xf32>
    tpu.vector_store %arg16[%c0_37, %c0_38], %60 {strides = array<i32>} : memref<8x16xf32, #tpu.memory_space<vmem>>, vector<8x16xf32>,
    return
  }
  func.func @transform_0(%arg0: i32) -> (i32, i32) {
    %c0_i32 = arith.constant 0 : i32
    %c0_i32_0 = arith.constant 0 : i32
    %c0_i32_1 = arith.constant 0 : i32
    return %c0_i32, %c0_i32_0 : i32, i32
  }
  func.func @transform_1(%arg0: i32) -> (i32, i32) {
    %c0_i32 = arith.constant 0 : i32
    %c0_i32_0 = arith.constant 0 : i32
    %c0_i32_1 = arith.constant 0 : i32
    return %c0_i32, %c0_i32_0 : i32, i32
  }
  func.func @transform_2(%arg0: i32) -> (i32, i32) {
    %c0_i32 = arith.constant 0 : i32
    %c0_i32_0 = arith.constant 0 : i32
    %c0_i32_1 = arith.constant 0 : i32
    return %c0_i32, %c0_i32_0 : i32, i32
  }
  func.func @transform_3(%arg0: i32) -> (i32, i32) {
    %c0_i32 = arith.constant 0 : i32
    %c0_i32_0 = arith.constant 0 : i32
    %c0_i32_1 = arith.constant 0 : i32
    return %c0_i32, %c0_i32_0 : i32, i32
  }
  func.func @transform_4(%arg0: i32) -> (i32, i32) {
    %c0_i32 = arith.constant 0 : i32
    %c0_i32_0 = arith.constant 0 : i32
    %c0_i32_1 = arith.constant 0 : i32
    return %c0_i32, %c0_i32_0 : i32, i32
  }
  func.func @transform_5(%arg0: i32) -> (i32, i32) {
    %c0_i32 = arith.constant 0 : i32
    %c0_i32_0 = arith.constant 0 : i32
    %c0_i32_1 = arith.constant 0 : i32
    return %c0_i32, %c0_i32_0 : i32, i32
  }
  func.func @transform_6(%arg0: i32) -> (i32, i32) {
    %c0_i32 = arith.constant 0 : i32
    %c0_i32_0 = arith.constant 0 : i32
    %c0_i32_1 = arith.constant 0 : i32
    return %c0_i32, %c0_i32_0 : i32, i32
  }
  func.func @transform_7(%arg0: i32) -> (i32, i32) {
    %c0_i32 = arith.constant 0 : i32
    %c0_i32_0 = arith.constant 0 : i32
    %c0_i32_1 = arith.constant 0 : i32
    return %c0_i32, %c0_i32_0 : i32, i32
  }
  func.func @transform_8(%arg0: i32) -> (i32, i32) {
    %c0_i32 = arith.constant 0 : i32
    %c0_i32_0 = arith.constant 0 : i32
    %c0_i32_1 = arith.constant 0 : i32
    return %c0_i32, %c0_i32_0 : i32, i32
  }
  func.func @transform_9(%arg0: i32) -> (i32, i32) {
    %c0_i32 = arith.constant 0 : i32
    %c0_i32_0 = arith.constant 0 : i32
    %c0_i32_1 = arith.constant 0 : i32
    return %c0_i32, %c0_i32_0 : i32, i32
  }
  func.func @transform_10(%arg0: i32) -> (i32, i32) {
    %c0_i32 = arith.constant 0 : i32
    %c0_i32_0 = arith.constant 0 : i32
    %c0_i32_1 = arith.constant 0 : i32
    return %c0_i32, %c0_i32_0 : i32, i32
  }
  func.func @transform_11(%arg0: i32) -> (i32, i32) {
    %c0_i32 = arith.constant 0 : i32
    %c0_i32_0 = arith.constant 0 : i32
    %c0_i32_1 = arith.constant 0 : i32
    return %c0_i32, %c0_i32_0 : i32, i32
  }
  func.func @transform_12(%arg0: i32) -> (i32, i32) {
    %c0_i32 = arith.constant 0 : i32
    %c0_i32_0 = arith.constant 0 : i32
    %c0_i32_1 = arith.constant 0 : i32
    return %c0_i32, %c0_i32_0 : i32, i32
  }
  func.func @transform_13(%arg0: i32) -> (i32, i32) {
    %c0_i32 = arith.constant 0 : i32
    %c0_i32_0 = arith.constant 0 : i32
    %c0_i32_1 = arith.constant 0 : i32
    return %c0_i32, %c0_i32_0 : i32, i32
  }
  func.func @transform_14(%arg0: i32) -> (i32, i32) {
    %c0_i32 = arith.constant 0 : i32
    %c0_i32_0 = arith.constant 0 : i32
    %c0_i32_1 = arith.constant 0 : i32
    return %c0_i32, %c0_i32_0 : i32, i32
  }
  func.func @transform_15(%arg0: i32) -> (i32, i32) {
    %c0_i32 = arith.constant 0 : i32
    %c0_i32_0 = arith.constant 0 : i32
    %c0_i32_1 = arith.constant 0 : i32
    return %c0_i32, %c0_i32_0 : i32, i32
  }
}

</mosaic_0001>

<llo_original>
// kernel: tpu_custom_call.1
$region0: #{tpu_custom_call.1}
  #allocation0 [shape = 'u32[]', space=smem, size = 0x4, offset = 0x4, fixed_abs, tag = 'smem constant byte address 0x4 - core index']
  #allocation1 [shape = 'u32[144,128]{1,0:T(1,128)}', space=vmem, size = 0x12000, scoped, tag = 'internal scratch']
  %s0 = inlined_call_operand.vmem [shape: bf16[8,1024], index: 0, kind: input, shape index: {}]
  %s1 = inlined_call_operand.hbm [shape: bf16[1024,512], index: 1, kind: input, shape index: {}]
  %s2 = inlined_call_operand.vmem [shape: f32[1,512], index: 2, kind: input, shape index: {}]
  %s3 = inlined_call_operand.vmem [shape: f32[1,512], index: 3, kind: input, shape index: {}]
  %s4 = inlined_call_operand.vmem [shape: f32[1,512], index: 4, kind: input, shape index: {}]
  %s5 = inlined_call_operand.vmem [shape: f32[1,512], index: 5, kind: input, shape index: {}]
  %s6 = inlined_call_operand.vmem [shape: f32[1,512], index: 6, kind: input, shape index: {}]
  %s7 = inlined_call_operand.hbm [shape: bf16[512,256], index: 7, kind: input, shape index: {}]
  %s8 = inlined_call_operand.vmem [shape: f32[1,256], index: 8, kind: input, shape index: {}]
  %s9 = inlined_call_operand.vmem [shape: f32[1,256], index: 9, kind: input, shape index: {}]
  %s10 = inlined_call_operand.vmem [shape: f32[1,256], index: 10, kind: input, shape index: {}]
  %s11 = inlined_call_operand.vmem [shape: f32[1,256], index: 11, kind: input, shape index: {}]
  %s12 = inlined_call_operand.vmem [shape: f32[1,256], index: 12, kind: input, shape index: {}]
  %s13 = inlined_call_operand.vmem [shape: bf16[256,16], index: 13, kind: input, shape index: {}]
  %s14 = inlined_call_operand.vmem [shape: f32[1,16], index: 14, kind: input, shape index: {}]
  %s15 = inlined_call_operand.hbm [shape: f32[8,16], index: 15, kind: output, shape index: {}]
  %s16 = sld [smem:[#allocation0]]
  $region78: #{tpu_custom_call.1} parent=0
    _
  %s18 = ssub.s32 1, %s16
  %s19 = scalar_select 0, %s18, %s16
  $region1: #{tpu_custom_call.1} parent=0
    #allocation2 [shape = 'u8[1048576]{0}', space=vmem, size = 0x100000, scoped, tag = 'input window, operand 1, single buffered']
    #allocation3 [shape = 's32[1]{0}', space=sflag, size = 0x4, scoped, tag = 'scoped memory for tpu_custom_call.1']
    #allocation4 [shape = 's32[1]{0}', space=sflag, size = 0x4, scoped, tag = 'scoped memory for tpu_custom_call.1']
    #allocation5 [shape = 'u8[262144]{0}', space=vmem, size = 0x40000, scoped, tag = 'input window, operand 7, single buffered']
    #allocation6 [shape = 's32[1]{0}', space=sflag, size = 0x4, scoped, tag = 'scoped memory for tpu_custom_call.1']
    #allocation7 [shape = 'u8[4096]{0}', space=vmem, size = 0x1000, scoped, tag = 'output window, operand 0, single buffered']
    %20 = vsyncpa [#allocation3], 0
    %21 = vsyncpa [#allocation6], 0
    %22 = vsyncpa [#allocation4], 0
    // Predicated region
    $region2: #{tpu_custom_call.1} parent=1 // pred_check
      _
    $region3: #{tpu_custom_call.1} parent=1 // pred_check_branch
      %24 = sbr.rel (0) target = $region5
    $region4: #{tpu_custom_call.1} parent=1 // pred_region
      _
    $region5: #{tpu_custom_call.1} parent=1 // pred_fallthru
      _
    // Predicated region
    $region6: #{tpu_custom_call.1} parent=1 // pred_check
      _
    $region7: #{tpu_custom_call.1} parent=1 // pred_check_branch
      %26 = sbr.rel (0) target = $region9
    $region8: #{tpu_custom_call.1} parent=1 // pred_region
      %s28 = ssub.s32 32768, 32768
      %29 = vsyncadd [#allocation3], %s28
      %s30 = sshll.u32 [#allocation2], 4
      %s31 = int_to_ptr.vmem [resolvable:$true] %s30
      %36 = dma.hbm_to_vmem [thread:$0]  %s1, 32768, %s31, [#allocation3], 256, 256, 16
    $region9: #{tpu_custom_call.1} parent=1 // pred_fallthru
      _
    // Predicated region
    $region10: #{tpu_custom_call.1} parent=1 // pred_check
      _
    $region11: #{tpu_custom_call.1} parent=1 // pred_check_branch
      %38 = sbr.rel (0) target = $region13
    $region12: #{tpu_custom_call.1} parent=1 // pred_region
      _
    $region13: #{tpu_custom_call.1} parent=1 // pred_fallthru
      _
    // Predicated region
    $region14: #{tpu_custom_call.1} parent=1 // pred_check
      _
    $region15: #{tpu_custom_call.1} parent=1 // pred_check_branch
      %40 = sbr.rel (0) target = $region17
    $region16: #{tpu_custom_call.1} parent=1 // pred_region
      _
    $region17: #{tpu_custom_call.1} parent=1 // pred_fallthru
      _
    // Predicated region
    $region18: #{tpu_custom_call.1} parent=1 // pred_check
      _
    $region19: #{tpu_custom_call.1} parent=1 // pred_check_branch
      %42 = sbr.rel (0) target = $region21
    $region20: #{tpu_custom_call.1} parent=1 // pred_region
      _
    $region21: #{tpu_custom_call.1} parent=1 // pred_fallthru
      _
    // Predicated region
    $region22: #{tpu_custom_call.1} parent=1 // pred_check
      _
    $region23: #{tpu_custom_call.1} parent=1 // pred_check_branch
      %44 = sbr.rel (0) target = $region25
    $region24: #{tpu_custom_call.1} parent=1 // pred_region
      _
    $region25: #{tpu_custom_call.1} parent=1 // pred_fallthru
      _
    // Predicated region
    $region26: #{tpu_custom_call.1} parent=1 // pred_check
      _
    $region27: #{tpu_custom_call.1} parent=1 // pred_check_branch
      %46 = sbr.rel (0) target = $region29
    $region28: #{tpu_custom_call.1} parent=1 // pred_region
      _
    $region29: #{tpu_custom_call.1} parent=1 // pred_fallthru
      _
    // Predicated region
    $region30: #{tpu_custom_call.1} parent=1 // pred_check
      _
    $region31: #{tpu_custom_call.1} parent=1 // pred_check_branch
      %48 = sbr.rel (0) target = $region33
    $region32: #{tpu_custom_call.1} parent=1 // pred_region
      %s50 = ssub.s32 8192, 8192
      %51 = vsyncadd [#allocation6], %s50
      %s52 = sshll.u32 [#allocation5], 4
      %s53 = int_to_ptr.vmem [resolvable:$true] %s52
      %58 = dma.hbm_to_vmem [thread:$0]  %s7, 8192, %s53, [#allocation6], 128, 128, 8
    $region33: #{tpu_custom_call.1} parent=1 // pred_fallthru
      _
    // Predicated region
    $region34: #{tpu_custom_call.1} parent=1 // pred_check
      _
    $region35: #{tpu_custom_call.1} parent=1 // pred_check_branch
      %60 = sbr.rel (0) target = $region37
    $region36: #{tpu_custom_call.1} parent=1 // pred_region
      _
    $region37: #{tpu_custom_call.1} parent=1 // pred_fallthru
      _
    // Predicated region
    $region38: #{tpu_custom_call.1} parent=1 // pred_check
      _
    $region39: #{tpu_custom_call.1} parent=1 // pred_check_branch
      %62 = sbr.rel (0) target = $region41
    $region40: #{tpu_custom_call.1} parent=1 // pred_region
      _
    $region41: #{tpu_custom_call.1} parent=1 // pred_fallthru
      _
    // Predicated region
    $region42: #{tpu_custom_call.1} parent=1 // pred_check
      _
    $region43: #{tpu_custom_call.1} parent=1 // pred_check_branch
      %64 = sbr.rel (0) target = $region45
    $region44: #{tpu_custom_call.1} parent=1 // pred_region
      _
    $region45: #{tpu_custom_call.1} parent=1 // pred_fallthru
      _
    // Predicated region
    $region46: #{tpu_custom_call.1} parent=1 // pred_check
      _
    $region47: #{tpu_custom_call.1} parent=1 // pred_check_branch
      %66 = sbr.rel (0) target = $region49
    $region48: #{tpu_custom_call.1} parent=1 // pred_region
      _
    $region49: #{tpu_custom_call.1} parent=1 // pred_fallthru
      _
    // Predicated region
    $region50: #{tpu_custom_call.1} parent=1 // pred_check
      _
    $region51: #{tpu_custom_call.1} parent=1 // pred_check_branch
      %68 = sbr.rel (0) target = $region53
    $region52: #{tpu_custom_call.1} parent=1 // pred_region
      _
    $region53: #{tpu_custom_call.1} parent=1 // pred_fallthru
      _
    // Predicated region
    $region54: #{tpu_custom_call.1} parent=1 // pred_check
      _
    $region55: #{tpu_custom_call.1} parent=1 // pred_check_branch
      %70 = sbr.rel (0) target = $region57
    $region56: #{tpu_custom_call.1} parent=1 // pred_region
      _
    $region57: #{tpu_custom_call.1} parent=1 // pred_fallthru
      _
    // Predicated region
    $region58: #{tpu_custom_call.1} parent=1 // pred_check
      _
    $region59: #{tpu_custom_call.1} parent=1 // pred_check_branch
      %72 = sbr.rel (0) target = $region61
    $region60: #{tpu_custom_call.1} parent=1 // pred_region
      _
    $region61: #{tpu_custom_call.1} parent=1 // pred_fallthru
      _
    // Predicated region
    $region62: #{tpu_custom_call.1} parent=1 // pred_check
      _
    $region63: #{tpu_custom_call.1} parent=1 // pred_check_branch
      %74 = sbr.rel (0) target = $region65
    $region64: #{tpu_custom_call.1} parent=1 // pred_region
      %75 = dma.done [#allocation3], 32768
    $region65: #{tpu_custom_call.1} parent=1 // pred_fallthru
      _
    // Predicated region
    $region66: #{tpu_custom_call.1} parent=1 // pred_check
      _
    $region67: #{tpu_custom_call.1} parent=1 // pred_check_branch
      %77 = sbr.rel (0) target = $region69
    $region68: #{tpu_custom_call.1} parent=1 // pred_region
      %78 = dma.done [#allocation6], 8192
    $region69: #{tpu_custom_call.1} parent=1 // pred_fallthru
      _
    %v80 = vld [vmem:[%s0] sm:$0xff]
    %v81 = vld [vmem:[%s0 + $0x8] sm:$0xff]
    %v82 = vld [vmem:[%s0 + $0x10] sm:$0xff]
    %v83 = vld [vmem:[%s0 + $0x18] sm:$0xff]
    %v84 = vld [vmem:[#allocation2] sm:$0xff]
    %v85 = vld [vmem:[#allocation2 + $0x8] sm:$0xff]
    %v86 = vld [vmem:[#allocation2 + $0x10] sm:$0xff]
    %v87 = vld [vmem:[#allocation2 + $0x18] sm:$0xff]
    %v88 = vld [vmem:[#allocation2 + $0x20] sm:$0xff]
    %v89 = vld [vmem:[#allocation2 + $0x28] sm:$0xff]
    %v90 = vld [vmem:[#allocation2 + $0x30] sm:$0xff]
    %v91 = vld [vmem:[#allocation2 + $0x38] sm:$0xff]
    %v92 = vld [vmem:[#allocation2 + $0x40] sm:$0xff]
    %v93 = vld [vmem:[#allocation2 + $0x48] sm:$0xff]
    %v94 = vld [vmem:[#allocation2 + $0x50] sm:$0xff]
    %v95 = vld [vmem:[#allocation2 + $0x58] sm:$0xff]
    %v96 = vld [vmem:[#allocation2 + $0x60] sm:$0xff]
    %v97 = vld [vmem:[#allocation2 + $0x68] sm:$0xff]
    %v98 = vld [vmem:[#allocation2 + $0x70] sm:$0xff]
    %v99 = vld [vmem:[#allocation2 + $0x78] sm:$0xff]
    %v100 = vld [vmem:[#allocation2 + $0x80] sm:$0xff]
    %v101 = vld [vmem:[#allocation2 + $0x88] sm:$0xff]
    %v102 = vld [vmem:[#allocation2 + $0x90] sm:$0xff]
    %v103 = vld [vmem:[#allocation2 + $0x98] sm:$0xff]
    %v104 = vld [vmem:[#allocation2 + $0xa0] sm:$0xff]
    %v105 = vld [vmem:[#allocation2 + $0xa8] sm:$0xff]
    %v106 = vld [vmem:[#allocation2 + $0xb0] sm:$0xff]
    %v107 = vld [vmem:[#allocation2 + $0xb8] sm:$0xff]
    %v108 = vld [vmem:[#allocation2 + $0xc0] sm:$0xff]
    %v109 = vld [vmem:[#allocation2 + $0xc8] sm:$0xff]
    %v110 = vld [vmem:[#allocation2 + $0xd0] sm:$0xff]
    %v111 = vld [vmem:[#allocation2 + $0xd8] sm:$0xff]
    %v112 = vld [vmem:[#allocation2 + $0xe0] sm:$0xff]
    %v113 = vld [vmem:[#allocation2 + $0xe8] sm:$0xff]
    %v114 = vld [vmem:[#allocation2 + $0xf0] sm:$0xff]
    %v115 = vld [vmem:[#allocation2 + $0xf8] sm:$0xff]
    %v116 = vld [vmem:[#allocation2 + $0x100] sm:$0xff]
    %v117 = vld [vmem:[#allocation2 + $0x108] sm:$0xff]
    %v118 = vld [vmem:[#allocation2 + $0x110] sm:$0xff]
    %v119 = vld [vmem:[#allocation2 + $0x118] sm:$0xff]
    %v120 = vld [vmem:[#allocation2 + $0x120] sm:$0xff]
    %v121 = vld [vmem:[#allocation2 + $0x128] sm:$0xff]
    %v122 = vld [vmem:[#allocation2 + $0x130] sm:$0xff]
    %v123 = vld [vmem:[#allocation2 + $0x138] sm:$0xff]
    %v124 = vld [vmem:[#allocation2 + $0x140] sm:$0xff]
    %v125 = vld [vmem:[#allocation2 + $0x148] sm:$0xff]
    %v126 = vld [vmem:[#allocation2 + $0x150] sm:$0xff]
    %v127 = vld [vmem:[#allocation2 + $0x158] sm:$0xff]
    %v128 = vld [vmem:[#allocation2 + $0x160] sm:$0xff]
    %v129 = vld [vmem:[#allocation2 + $0x168] sm:$0xff]
    %v130 = vld [vmem:[#allocation2 + $0x170] sm:$0xff]
    %v131 = vld [vmem:[#allocation2 + $0x178] sm:$0xff]
    %v132 = vld [vmem:[#allocation2 + $0x180] sm:$0xff]
    %v133 = vld [vmem:[#allocation2 + $0x188] sm:$0xff]
    %v134 = vld [vmem:[#allocation2 + $0x190] sm:$0xff]
    %v135 = vld [vmem:[#allocation2 + $0x198] sm:$0xff]
    %v136 = vld [vmem:[#allocation2 + $0x1a0] sm:$0xff]
    %v137 = vld [vmem:[#allocation2 + $0x1a8] sm:$0xff]
    %v138 = vld [vmem:[#allocation2 + $0x1b0] sm:$0xff]
    %v139 = vld [vmem:[#allocation2 + $0x1b8] sm:$0xff]
    %v140 = vld [vmem:[#allocation2 + $0x1c0] sm:$0xff]
    %v141 = vld [vmem:[#allocation2 + $0x1c8] sm:$0xff]
    %v142 = vld [vmem:[#allocation2 + $0x1d0] sm:$0xff]
    %v143 = vld [vmem:[#allocation2 + $0x1d8] sm:$0xff]
    %v144 = vld [vmem:[#allocation2 + $0x1e0] sm:$0xff]
    %v145 = vld [vmem:[#allocation2 + $0x1e8] sm:$0xff]
    %v146 = vld [vmem:[#allocation2 + $0x1f0] sm:$0xff]
    %v147 = vld [vmem:[#allocation2 + $0x1f8] sm:$0xff]
    %v148 = vld [vmem:[#allocation2 + $0x200] sm:$0xff]
    %v149 = vld [vmem:[#allocation2 + $0x208] sm:$0xff]
    %v150 = vld [vmem:[#allocation2 + $0x210] sm:$0xff]
    %v151 = vld [vmem:[#allocation2 + $0x218] sm:$0xff]
    %v152 = vld [vmem:[#allocation2 + $0x220] sm:$0xff]
    %v153 = vld [vmem:[#allocation2 + $0x228] sm:$0xff]
    %v154 = vld [vmem:[#allocation2 + $0x230] sm:$0xff]
    %v155 = vld [vmem:[#allocation2 + $0x238] sm:$0xff]
    %v156 = vld [vmem:[#allocation2 + $0x240] sm:$0xff]
    %v157 = vld [vmem:[#allocation2 + $0x248] sm:$0xff]
    %v158 = vld [vmem:[#allocation2 + $0x250] sm:$0xff]
    %v159 = vld [vmem:[#allocation2 + $0x258] sm:$0xff]
    %v160 = vld [vmem:[#allocation2 + $0x260] sm:$0xff]
    %v161 = vld [vmem:[#allocation2 + $0x268] sm:$0xff]
    %v162 = vld [vmem:[#allocation2 + $0x270] sm:$0xff]
    %v163 = vld [vmem:[#allocation2 + $0x278] sm:$0xff]
    %v164 = vld [vmem:[#allocation2 + $0x280] sm:$0xff]
    %v165 = vld [vmem:[#allocation2 + $0x288] sm:$0xff]
    %v166 = vld [vmem:[#allocation2 + $0x290] sm:$0xff]
    %v167 = vld [vmem:[#allocation2 + $0x298] sm:$0xff]
    %v168 = vld [vmem:[#allocation2 + $0x2a0] sm:$0xff]
    %v169 = vld [vmem:[#allocation2 + $0x2a8] sm:$0xff]
    %v170 = vld [vmem:[#allocation2 + $0x2b0] sm:$0xff]
    %v171 = vld [vmem:[#allocation2 + $0x2b8] sm:$0xff]
    %v172 = vld [vmem:[#allocation2 + $0x2c0] sm:$0xff]
    %v173 = vld [vmem:[#allocation2 + $0x2c8] sm:$0xff]
    %v174 = vld [vmem:[#allocation2 + $0x2d0] sm:$0xff]
    %v175 = vld [vmem:[#allocation2 + $0x2d8] sm:$0xff]
    %v176 = vld [vmem:[#allocation2 + $0x2e0] sm:$0xff]
    %v177 = vld [vmem:[#allocation2 + $0x2e8] sm:$0xff]
    %v178 = vld [vmem:[#allocation2 + $0x2f0] sm:$0xff]
    %v179 = vld [vmem:[#allocation2 + $0x2f8] sm:$0xff]
    %v180 = vld [vmem:[#allocation2 + $0x300] sm:$0xff]
    %v181 = vld [vmem:[#allocation2 + $0x308] sm:$0xff]
    %v182 = vld [vmem:[#allocation2 + $0x310] sm:$0xff]
    %v183 = vld [vmem:[#allocation2 + $0x318] sm:$0xff]
    %v184 = vld [vmem:[#allocation2 + $0x320] sm:$0xff]
    %v185 = vld [vmem:[#allocation2 + $0x328] sm:$0xff]
    %v186 = vld [vmem:[#allocation2 + $0x330] sm:$0xff]
    %v187 = vld [vmem:[#allocation2 + $0x338] sm:$0xff]
    %v188 = vld [vmem:[#allocation2 + $0x340] sm:$0xff]
    %v189 = vld [vmem:[#allocation2 + $0x348] sm:$0xff]
    %v190 = vld [vmem:[#allocation2 + $0x350] sm:$0xff]
    %v191 = vld [vmem:[#allocation2 + $0x358] sm:$0xff]
    %v192 = vld [vmem:[#allocation2 + $0x360] sm:$0xff]
    %v193 = vld [vmem:[#allocation2 + $0x368] sm:$0xff]
    %v194 = vld [vmem:[#allocation2 + $0x370] sm:$0xff]
    %v195 = vld [vmem:[#allocation2 + $0x378] sm:$0xff]
    %v196 = vld [vmem:[#allocation2 + $0x380] sm:$0xff]
    %v197 = vld [vmem:[#allocation2 + $0x388] sm:$0xff]
    %v198 = vld [vmem:[#allocation2 + $0x390] sm:$0xff]
    %v199 = vld [vmem:[#allocation2 + $0x398] sm:$0xff]
    %v200 = vld [vmem:[#allocation2 + $0x3a0] sm:$0xff]
    %v201 = vld [vmem:[#allocation2 + $0x3a8] sm:$0xff]
    %v202 = vld [vmem:[#allocation2 + $0x3b0] sm:$0xff]
    %v203 = vld [vmem:[#allocation2 + $0x3b8] sm:$0xff]
    %v204 = vld [vmem:[#allocation2 + $0x3c0] sm:$0xff]
    %v205 = vld [vmem:[#allocation2 + $0x3c8] sm:$0xff]
    %v206 = vld [vmem:[#allocation2 + $0x3d0] sm:$0xff]
    %v207 = vld [vmem:[#allocation2 + $0x3d8] sm:$0xff]
    %v208 = vld [vmem:[#allocation2 + $0x3e0] sm:$0xff]
    %v209 = vld [vmem:[#allocation2 + $0x3e8] sm:$0xff]
    %v210 = vld [vmem:[#allocation2 + $0x3f0] sm:$0xff]
    %v211 = vld [vmem:[#allocation2 + $0x3f8] sm:$0xff]
    %v212 = vld [vmem:[#allocation2 + $0x400] sm:$0xff]
    %v213 = vld [vmem:[#allocation2 + $0x408] sm:$0xff]
    %v214 = vld [vmem:[#allocation2 + $0x410] sm:$0xff]
    %v215 = vld [vmem:[#allocation2 + $0x418] sm:$0xff]
    %v216 = vld [vmem:[#allocation2 + $0x420] sm:$0xff]
    %v217 = vld [vmem:[#allocation2 + $0x428] sm:$0xff]
    %v218 = vld [vmem:[#allocation2 + $0x430] sm:$0xff]
    %v219 = vld [vmem:[#allocation2 + $0x438] sm:$0xff]
    %v220 = vld [vmem:[#allocation2 + $0x440] sm:$0xff]
    %v221 = vld [vmem:[#allocation2 + $0x448] sm:$0xff]
    %v222 = vld [vmem:[#allocation2 + $0x450] sm:$0xff]
    %v223 = vld [vmem:[#allocation2 + $0x458] sm:$0xff]
    %v224 = vld [vmem:[#allocation2 + $0x460] sm:$0xff]
    %v225 = vld [vmem:[#allocation2 + $0x468] sm:$0xff]
    %v226 = vld [vmem:[#allocation2 + $0x470] sm:$0xff]
    %v227 = vld [vmem:[#allocation2 + $0x478] sm:$0xff]
    %v228 = vld [vmem:[#allocation2 + $0x480] sm:$0xff]
    %v229 = vld [vmem:[#allocation2 + $0x488] sm:$0xff]
    %v230 = vld [vmem:[#allocation2 + $0x490] sm:$0xff]
    %v231 = vld [vmem:[#allocation2 + $0x498] sm:$0xff]
    %v232 = vld [vmem:[#allocation2 + $0x4a0] sm:$0xff]
    %v233 = vld [vmem:[#allocation2 + $0x4a8] sm:$0xff]
    %v234 = vld [vmem:[#allocation2 + $0x4b0] sm:$0xff]
    %v235 = vld [vmem:[#allocation2 + $0x4b8] sm:$0xff]
    %v236 = vld [vmem:[#allocation2 + $0x4c0] sm:$0xff]
    %v237 = vld [vmem:[#allocation2 + $0x4c8] sm:$0xff]
    %v238 = vld [vmem:[#allocation2 + $0x4d0] sm:$0xff]
    %v239 = vld [vmem:[#allocation2 + $0x4d8] sm:$0xff]
    %v240 = vld [vmem:[#allocation2 + $0x4e0] sm:$0xff]
    %v241 = vld [vmem:[#allocation2 + $0x4e8] sm:$0xff]
    %v242 = vld [vmem:[#allocation2 + $0x4f0] sm:$0xff]
    %v243 = vld [vmem:[#allocation2 + $0x4f8] sm:$0xff]
    %v244 = vld [vmem:[#allocation2 + $0x500] sm:$0xff]
    %v245 = vld [vmem:[#allocation2 + $0x508] sm:$0xff]
    %v246 = vld [vmem:[#allocation2 + $0x510] sm:$0xff]
    %v247 = vld [vmem:[#allocation2 + $0x518] sm:$0xff]
    %v248 = vld [vmem:[#allocation2 + $0x520] sm:$0xff]
    %v249 = vld [vmem:[#allocation2 + $0x528] sm:$0xff]
    %v250 = vld [vmem:[#allocation2 + $0x530] sm:$0xff]
    %v251 = vld [vmem:[#allocation2 + $0x538] sm:$0xff]
    %v252 = vld [vmem:[#allocation2 + $0x540] sm:$0xff]
    %v253 = vld [vmem:[#allocation2 + $0x548] sm:$0xff]
    %v254 = vld [vmem:[#allocation2 + $0x550] sm:$0xff]
    %v255 = vld [vmem:[#allocation2 + $0x558] sm:$0xff]
    %v256 = vld [vmem:[#allocation2 + $0x560] sm:$0xff]
    %v257 = vld [vmem:[#allocation2 + $0x568] sm:$0xff]
    %v258 = vld [vmem:[#allocation2 + $0x570] sm:$0xff]
    %v259 = vld [vmem:[#allocation2 + $0x578] sm:$0xff]
    %v260 = vld [vmem:[#allocation2 + $0x580] sm:$0xff]
    %v261 = vld [vmem:[#allocation2 + $0x588] sm:$0xff]
    %v262 = vld [vmem:[#allocation2 + $0x590] sm:$0xff]
    %v263 = vld [vmem:[#allocation2 + $0x598] sm:$0xff]
    %v264 = vld [vmem:[#allocation2 + $0x5a0] sm:$0xff]
    %v265 = vld [vmem:[#allocation2 + $0x5a8] sm:$0xff]
    %v266 = vld [vmem:[#allocation2 + $0x5b0] sm:$0xff]
    %v267 = vld [vmem:[#allocation2 + $0x5b8] sm:$0xff]
    %v268 = vld [vmem:[#allocation2 + $0x5c0] sm:$0xff]
    %v269 = vld [vmem:[#allocation2 + $0x5c8] sm:$0xff]
    %v270 = vld [vmem:[#allocation2 + $0x5d0] sm:$0xff]
    %v271 = vld [vmem:[#allocation2 + $0x5d8] sm:$0xff]
    %v272 = vld [vmem:[#allocation2 + $0x5e0] sm:$0xff]
    %v273 = vld [vmem:[#allocation2 + $0x5e8] sm:$0xff]
    %v274 = vld [vmem:[#allocation2 + $0x5f0] sm:$0xff]
    %v275 = vld [vmem:[#allocation2 + $0x5f8] sm:$0xff]
    %v276 = vld [vmem:[#allocation2 + $0x600] sm:$0xff]
    %v277 = vld [vmem:[#allocation2 + $0x608] sm:$0xff]
    %v278 = vld [vmem:[#allocation2 + $0x610] sm:$0xff]
    %v279 = vld [vmem:[#allocation2 + $0x618] sm:$0xff]
    %v280 = vld [vmem:[#allocation2 + $0x620] sm:$0xff]
    %v281 = vld [vmem:[#allocation2 + $0x628] sm:$0xff]
    %v282 = vld [vmem:[#allocation2 + $0x630] sm:$0xff]
    %v283 = vld [vmem:[#allocation2 + $0x638] sm:$0xff]
    %v284 = vld [vmem:[#allocation2 + $0x640] sm:$0xff]
    %v285 = vld [vmem:[#allocation2 + $0x648] sm:$0xff]
    %v286 = vld [vmem:[#allocation2 + $0x650] sm:$0xff]
    %v287 = vld [vmem:[#allocation2 + $0x658] sm:$0xff]
    %v288 = vld [vmem:[#allocation2 + $0x660] sm:$0xff]
    %v289 = vld [vmem:[#allocation2 + $0x668] sm:$0xff]
    %v290 = vld [vmem:[#allocation2 + $0x670] sm:$0xff]
    %v291 = vld [vmem:[#allocation2 + $0x678] sm:$0xff]
    %v292 = vld [vmem:[#allocation2 + $0x680] sm:$0xff]
    %v293 = vld [vmem:[#allocation2 + $0x688] sm:$0xff]
    %v294 = vld [vmem:[#allocation2 + $0x690] sm:$0xff]
    %v295 = vld [vmem:[#allocation2 + $0x698] sm:$0xff]
    %v296 = vld [vmem:[#allocation2 + $0x6a0] sm:$0xff]
    %v297 = vld [vmem:[#allocation2 + $0x6a8] sm:$0xff]
    %v298 = vld [vmem:[#allocation2 + $0x6b0] sm:$0xff]
    %v299 = vld [vmem:[#allocation2 + $0x6b8] sm:$0xff]
    %v300 = vld [vmem:[#allocation2 + $0x6c0] sm:$0xff]
    %v301 = vld [vmem:[#allocation2 + $0x6c8] sm:$0xff]
    %v302 = vld [vmem:[#allocation2 + $0x6d0] sm:$0xff]
    %v303 = vld [vmem:[#allocation2 + $0x6d8] sm:$0xff]
    %v304 = vld [vmem:[#allocation2 + $0x6e0] sm:$0xff]
    %v305 = vld [vmem:[#allocation2 + $0x6e8] sm:$0xff]
    %v306 = vld [vmem:[#allocation2 + $0x6f0] sm:$0xff]
    %v307 = vld [vmem:[#allocation2 + $0x6f8] sm:$0xff]
    %v308 = vld [vmem:[#allocation2 + $0x700] sm:$0xff]
    %v309 = vld [vmem:[#allocation2 + $0x708] sm:$0xff]
    %v310 = vld [vmem:[#allocation2 + $0x710] sm:$0xff]
    %v311 = vld [vmem:[#allocation2 + $0x718] sm:$0xff]
    %v312 = vld [vmem:[#allocation2 + $0x720] sm:$0xff]
    %v313 = vld [vmem:[#allocation2 + $0x728] sm:$0xff]
    %v314 = vld [vmem:[#allocation2 + $0x730] sm:$0xff]
    %v315 = vld [vmem:[#allocation2 + $0x738] sm:$0xff]
    %v316 = vld [vmem:[#allocation2 + $0x740] sm:$0xff]
    %v317 = vld [vmem:[#allocation2 + $0x748] sm:$0xff]
    %v318 = vld [vmem:[#allocation2 + $0x750] sm:$0xff]
    %v319 = vld [vmem:[#allocation2 + $0x758] sm:$0xff]
    %v320 = vld [vmem:[#allocation2 + $0x760] sm:$0xff]
    %v321 = vld [vmem:[#allocation2 + $0x768] sm:$0xff]
    %v322 = vld [vmem:[#allocation2 + $0x770] sm:$0xff]
    %v323 = vld [vmem:[#allocation2 + $0x778] sm:$0xff]
    %v324 = vld [vmem:[#allocation2 + $0x780] sm:$0xff]
    %v325 = vld [vmem:[#allocation2 + $0x788] sm:$0xff]
    %v326 = vld [vmem:[#allocation2 + $0x790] sm:$0xff]
    %v327 = vld [vmem:[#allocation2 + $0x798] sm:$0xff]
    %v328 = vld [vmem:[#allocation2 + $0x7a0] sm:$0xff]
    %v329 = vld [vmem:[#allocation2 + $0x7a8] sm:$0xff]
    %v330 = vld [vmem:[#allocation2 + $0x7b0] sm:$0xff]
    %v331 = vld [vmem:[#allocation2 + $0x7b8] sm:$0xff]
    %v332 = vld [vmem:[#allocation2 + $0x7c0] sm:$0xff]
    %v333 = vld [vmem:[#allocation2 + $0x7c8] sm:$0xff]
    %v334 = vld [vmem:[#allocation2 + $0x7d0] sm:$0xff]
    %v335 = vld [vmem:[#allocation2 + $0x7d8] sm:$0xff]
    %v336 = vld [vmem:[#allocation2 + $0x7e0] sm:$0xff]
    %v337 = vld [vmem:[#allocation2 + $0x7e8] sm:$0xff]
    %v338 = vld [vmem:[#allocation2 + $0x7f0] sm:$0xff]
    %v339 = vld [vmem:[#allocation2 + $0x7f8] sm:$0xff]
    %v340 = vld [vmem:[%s2] sm:$0xf]
    %v342 = vlaneseq
    %v343 = vshrl.u32 %v342, 7
    %v344 = vsub.s32 0, %v343
    %v345 = vrot.slane %v340, %v344
    %v346 = vlaneseq
    %v347 = vshrl.u32 %v346, 7
    %v348 = vsub.s32 1, %v347
    %v349 = vrot.slane %v340, %v348
    %v350 = vlaneseq
    %v351 = vshrl.u32 %v350, 7
    %v352 = vsub.s32 2, %v351
    %v353 = vrot.slane %v340, %v352
    %v354 = vlaneseq
    %v355 = vshrl.u32 %v354, 7
    %v356 = vsub.s32 3, %v355
    %v357 = vrot.slane %v340, %v356
    %v366 = vunpack.c.l.b16 %v80
    %v367 = vunpack.c.h.b16 %v80
    %v368 = vunpack.c.l.b16 %v81
    %v369 = vunpack.c.h.b16 %v81
    %v370 = vunpack.c.l.b16 %v82
    %v371 = vunpack.c.h.b16 %v82
    %v372 = vunpack.c.l.b16 %v83
    %v373 = vunpack.c.h.b16 %v83
    %v374 = vpack.c.b16 %v366, %v366
    %v375 = vpack.c.b16 %v367, %v367
    %v376 = vpack.c.b16 %v368, %v368
    %v377 = vpack.c.b16 %v369, %v369
    %v378 = vpack.c.b16 %v370, %v370
    %v379 = vpack.c.b16 %v371, %v371
    %v380 = vpack.c.b16 %v372, %v372
    %v381 = vpack.c.b16 %v373, %v373
    %v646 = vunpack.c.l.b16 %v84
    %v647 = vunpack.c.h.b16 %v84
    %v648 = vunpack.c.l.b16 %v85
    %v649 = vunpack.c.h.b16 %v85
    %v650 = vunpack.c.l.b16 %v86
    %v651 = vunpack.c.h.b16 %v86
    %v652 = vunpack.c.l.b16 %v87
    %v653 = vunpack.c.h.b16 %v87
    %v654 = vunpack.c.l.b16 %v88
    %v655 = vunpack.c.h.b16 %v88
    %v656 = vunpack.c.l.b16 %v89
    %v657 = vunpack.c.h.b16 %v89
    %v658 = vunpack.c.l.b16 %v90
    %v659 = vunpack.c.h.b16 %v90
    %v660 = vunpack.c.l.b16 %v91
    %v661 = vunpack.c.h.b16 %v91
    %v662 = vunpack.c.l.b16 %v92
    %v663 = vunpack.c.h.b16 %v92
    %v664 = vunpack.c.l.b16 %v93
    %v665 = vunpack.c.h.b16 %v93
    %v666 = vunpack.c.l.b16 %v94
    %v667 = vunpack.c.h.b16 %v94
    %v668 = vunpack.c.l.b16 %v95
    %v669 = vunpack.c.h.b16 %v95
    %v670 = vunpack.c.l.b16 %v96
    %v671 = vunpack.c.h.b16 %v96
    %v672 = vunpack.c.l.b16 %v97
    %v673 = vunpack.c.h.b16 %v97
    %v674 = vunpack.c.l.b16 %v98
    %v675 = vunpack.c.h.b16 %v98
    %v676 = vunpack.c.l.b16 %v99
    %v677 = vunpack.c.h.b16 %v99
    %v678 = vunpack.c.l.b16 %v100
    %v679 = vunpack.c.h.b16 %v100
    %v680 = vunpack.c.l.b16 %v101
    %v681 = vunpack.c.h.b16 %v101
    %v682 = vunpack.c.l.b16 %v102
    %v683 = vunpack.c.h.b16 %v102
    %v684 = vunpack.c.l.b16 %v103
    %v685 = vunpack.c.h.b16 %v103
    %v686 = vunpack.c.l.b16 %v104
    %v687 = vunpack.c.h.b16 %v104
    %v688 = vunpack.c.l.b16 %v105
    %v689 = vunpack.c.h.b16 %v105
    %v690 = vunpack.c.l.b16 %v106
    %v691 = vunpack.c.h.b16 %v106
    %v692 = vunpack.c.l.b16 %v107
    %v693 = vunpack.c.h.b16 %v107
    %v694 = vunpack.c.l.b16 %v108
    %v695 = vunpack.c.h.b16 %v108
    %v696 = vunpack.c.l.b16 %v109
    %v697 = vunpack.c.h.b16 %v109
    %v698 = vunpack.c.l.b16 %v110
    %v699 = vunpack.c.h.b16 %v110
    %v700 = vunpack.c.l.b16 %v111
    %v701 = vunpack.c.h.b16 %v111
    %v702 = vunpack.c.l.b16 %v112
    %v703 = vunpack.c.h.b16 %v112
    %v704 = vunpack.c.l.b16 %v113
    %v705 = vunpack.c.h.b16 %v113
    %v706 = vunpack.c.l.b16 %v114
    %v707 = vunpack.c.h.b16 %v114
    %v708 = vunpack.c.l.b16 %v115
    %v709 = vunpack.c.h.b16 %v115
    %v710 = vunpack.c.l.b16 %v116
    %v711 = vunpack.c.h.b16 %v116
    %v712 = vunpack.c.l.b16 %v117
    %v713 = vunpack.c.h.b16 %v117
    %v714 = vunpack.c.l.b16 %v118
    %v715 = vunpack.c.h.b16 %v118
    %v716 = vunpack.c.l.b16 %v119
    %v717 = vunpack.c.h.b16 %v119
    %v718 = vunpack.c.l.b16 %v120
    %v719 = vunpack.c.h.b16 %v120
    %v720 = vunpack.c.l.b16 %v121
    %v721 = vunpack.c.h.b16 %v121
    %v722 = vunpack.c.l.b16 %v122
    %v723 = vunpack.c.h.b16 %v122
    %v724 = vunpack.c.l.b16 %v123
    %v725 = vunpack.c.h.b16 %v123
    %v726 = vunpack.c.l.b16 %v124
    %v727 = vunpack.c.h.b16 %v124
    %v728 = vunpack.c.l.b16 %v125
    %v729 = vunpack.c.h.b16 %v125
    %v730 = vunpack.c.l.b16 %v126
    %v731 = vunpack.c.h.b16 %v126
    %v732 = vunpack.c.l.b16 %v127
    %v733 = vunpack.c.h.b16 %v127
    %v734 = vunpack.c.l.b16 %v128
    %v735 = vunpack.c.h.b16 %v128
    %v736 = vunpack.c.l.b16 %v129
    %v737 = vunpack.c.h.b16 %v129
    %v738 = vunpack.c.l.b16 %v130
    %v739 = vunpack.c.h.b16 %v130
    %v740 = vunpack.c.l.b16 %v131
    %v741 = vunpack.c.h.b16 %v131
    %v742 = vunpack.c.l.b16 %v132
    %v743 = vunpack.c.h.b16 %v132
    %v744 = vunpack.c.l.b16 %v133
    %v745 = vunpack.c.h.b16 %v133
    %v746 = vunpack.c.l.b16 %v134
    %v747 = vunpack.c.h.b16 %v134
    %v748 = vunpack.c.l.b16 %v135
    %v749 = vunpack.c.h.b16 %v135
    %v750 = vunpack.c.l.b16 %v136
    %v751 = vunpack.c.h.b16 %v136
    %v752 = vunpack.c.l.b16 %v137
    %v753 = vunpack.c.h.b16 %v137
    %v754 = vunpack.c.l.b16 %v138
    %v755 = vunpack.c.h.b16 %v138
    %v756 = vunpack.c.l.b16 %v139
    %v757 = vunpack.c.h.b16 %v139
    %v758 = vunpack.c.l.b16 %v140
    %v759 = vunpack.c.h.b16 %v140
    %v760 = vunpack.c.l.b16 %v141
    %v761 = vunpack.c.h.b16 %v141
    %v762 = vunpack.c.l.b16 %v142
    %v763 = vunpack.c.h.b16 %v142
    %v764 = vunpack.c.l.b16 %v143
    %v765 = vunpack.c.h.b16 %v143
    %v766 = vunpack.c.l.b16 %v144
    %v767 = vunpack.c.h.b16 %v144
    %v768 = vunpack.c.l.b16 %v145
    %v769 = vunpack.c.h.b16 %v145
    %v770 = vunpack.c.l.b16 %v146
    %v771 = vunpack.c.h.b16 %v146
    %v772 = vunpack.c.l.b16 %v147
    %v773 = vunpack.c.h.b16 %v147
    %v774 = vunpack.c.l.b16 %v148
    %v775 = vunpack.c.h.b16 %v148
    %v776 = vunpack.c.l.b16 %v149
    %v777 = vunpack.c.h.b16 %v149
    %v778 = vunpack.c.l.b16 %v150
    %v779 = vunpack.c.h.b16 %v150
    %v780 = vunpack.c.l.b16 %v151
    %v781 = vunpack.c.h.b16 %v151
    %v782 = vunpack.c.l.b16 %v152
    %v783 = vunpack.c.h.b16 %v152
    %v784 = vunpack.c.l.b16 %v153
    %v785 = vunpack.c.h.b16 %v153
    %v786 = vunpack.c.l.b16 %v154
    %v787 = vunpack.c.h.b16 %v154
    %v788 = vunpack.c.l.b16 %v155
    %v789 = vunpack.c.h.b16 %v155
    %v790 = vunpack.c.l.b16 %v156
    %v791 = vunpack.c.h.b16 %v156
    %v792 = vunpack.c.l.b16 %v157
    %v793 = vunpack.c.h.b16 %v157
    %v794 = vunpack.c.l.b16 %v158
    %v795 = vunpack.c.h.b16 %v158
    %v796 = vunpack.c.l.b16 %v159
    %v797 = vunpack.c.h.b16 %v159
    %v798 = vunpack.c.l.b16 %v160
    %v799 = vunpack.c.h.b16 %v160
    %v800 = vunpack.c.l.b16 %v161
    %v801 = vunpack.c.h.b16 %v161
    %v802 = vunpack.c.l.b16 %v162
    %v803 = vunpack.c.h.b16 %v162
    %v804 = vunpack.c.l.b16 %v163
    %v805 = vunpack.c.h.b16 %v163
    %v806 = vunpack.c.l.b16 %v164
    %v807 = vunpack.c.h.b16 %v164
    %v808 = vunpack.c.l.b16 %v165
    %v809 = vunpack.c.h.b16 %v165
    %v810 = vunpack.c.l.b16 %v166
    %v811 = vunpack.c.h.b16 %v166
    %v812 = vunpack.c.l.b16 %v167
    %v813 = vunpack.c.h.b16 %v167
    %v814 = vunpack.c.l.b16 %v168
    %v815 = vunpack.c.h.b16 %v168
    %v816 = vunpack.c.l.b16 %v169
    %v817 = vunpack.c.h.b16 %v169
    %v818 = vunpack.c.l.b16 %v170
    %v819 = vunpack.c.h.b16 %v170
    %v820 = vunpack.c.l.b16 %v171
    %v821 = vunpack.c.h.b16 %v171
    %v822 = vunpack.c.l.b16 %v172
    %v823 = vunpack.c.h.b16 %v172
    %v824 = vunpack.c.l.b16 %v173
    %v825 = vunpack.c.h.b16 %v173
    %v826 = vunpack.c.l.b16 %v174
    %v827 = vunpack.c.h.b16 %v174
    %v828 = vunpack.c.l.b16 %v175
    %v829 = vunpack.c.h.b16 %v175
    %v830 = vunpack.c.l.b16 %v176
    %v831 = vunpack.c.h.b16 %v176
    %v832 = vunpack.c.l.b16 %v177
    %v833 = vunpack.c.h.b16 %v177
    %v834 = vunpack.c.l.b16 %v178
    %v835 = vunpack.c.h.b16 %v178
    %v836 = vunpack.c.l.b16 %v179
    %v837 = vunpack.c.h.b16 %v179
    %v838 = vunpack.c.l.b16 %v180
    %v839 = vunpack.c.h.b16 %v180
    %v840 = vunpack.c.l.b16 %v181
    %v841 = vunpack.c.h.b16 %v181
    %v842 = vunpack.c.l.b16 %v182
    %v843 = vunpack.c.h.b16 %v182
    %v844 = vunpack.c.l.b16 %v183
    %v845 = vunpack.c.h.b16 %v183
    %v846 = vunpack.c.l.b16 %v184
    %v847 = vunpack.c.h.b16 %v184
    %v848 = vunpack.c.l.b16 %v185
    %v849 = vunpack.c.h.b16 %v185
    %v850 = vunpack.c.l.b16 %v186
    %v851 = vunpack.c.h.b16 %v186
    %v852 = vunpack.c.l.b16 %v187
    %v853 = vunpack.c.h.b16 %v187
    %v854 = vunpack.c.l.b16 %v188
    %v855 = vunpack.c.h.b16 %v188
    %v856 = vunpack.c.l.b16 %v189
    %v857 = vunpack.c.h.b16 %v189
    %v858 = vunpack.c.l.b16 %v190
    %v859 = vunpack.c.h.b16 %v190
    %v860 = vunpack.c.l.b16 %v191
    %v861 = vunpack.c.h.b16 %v191
    %v862 = vunpack.c.l.b16 %v192
    %v863 = vunpack.c.h.b16 %v192
    %v864 = vunpack.c.l.b16 %v193
    %v865 = vunpack.c.h.b16 %v193
    %v866 = vunpack.c.l.b16 %v194
    %v867 = vunpack.c.h.b16 %v194
    %v868 = vunpack.c.l.b16 %v195
    %v869 = vunpack.c.h.b16 %v195
    %v870 = vunpack.c.l.b16 %v196
    %v871 = vunpack.c.h.b16 %v196
    %v872 = vunpack.c.l.b16 %v197
    %v873 = vunpack.c.h.b16 %v197
    %v874 = vunpack.c.l.b16 %v198
    %v875 = vunpack.c.h.b16 %v198
    %v876 = vunpack.c.l.b16 %v199
    %v877 = vunpack.c.h.b16 %v199
    %v878 = vunpack.c.l.b16 %v200
    %v879 = vunpack.c.h.b16 %v200
    %v880 = vunpack.c.l.b16 %v201
    %v881 = vunpack.c.h.b16 %v201
    %v882 = vunpack.c.l.b16 %v202
    %v883 = vunpack.c.h.b16 %v202
    %v884 = vunpack.c.l.b16 %v203
    %v885 = vunpack.c.h.b16 %v203
    %v886 = vunpack.c.l.b16 %v204
    %v887 = vunpack.c.h.b16 %v204
    %v888 = vunpack.c.l.b16 %v205
    %v889 = vunpack.c.h.b16 %v205
    %v890 = vunpack.c.l.b16 %v206
    %v891 = vunpack.c.h.b16 %v206
    %v892 = vunpack.c.l.b16 %v207
    %v893 = vunpack.c.h.b16 %v207
    %v894 = vunpack.c.l.b16 %v208
    %v895 = vunpack.c.h.b16 %v208
    %v896 = vunpack.c.l.b16 %v209
    %v897 = vunpack.c.h.b16 %v209
    %v898 = vunpack.c.l.b16 %v210
    %v899 = vunpack.c.h.b16 %v210
    %v900 = vunpack.c.l.b16 %v211
    %v901 = vunpack.c.h.b16 %v211
    %v902 = vunpack.c.l.b16 %v212
    %v903 = vunpack.c.h.b16 %v212
    %v904 = vunpack.c.l.b16 %v213
    %v905 = vunpack.c.h.b16 %v213
    %v906 = vunpack.c.l.b16 %v214
    %v907 = vunpack.c.h.b16 %v214
    %v908 = vunpack.c.l.b16 %v215
    %v909 = vunpack.c.h.b16 %v215
    %v910 = vunpack.c.l.b16 %v216
    %v911 = vunpack.c.h.b16 %v216
    %v912 = vunpack.c.l.b16 %v217
    %v913 = vunpack.c.h.b16 %v217
    %v914 = vunpack.c.l.b16 %v218
    %v915 = vunpack.c.h.b16 %v218
    %v916 = vunpack.c.l.b16 %v219
    %v917 = vunpack.c.h.b16 %v219
    %v918 = vunpack.c.l.b16 %v220
    %v919 = vunpack.c.h.b16 %v220
    %v920 = vunpack.c.l.b16 %v221
    %v921 = vunpack.c.h.b16 %v221
    %v922 = vunpack.c.l.b16 %v222
    %v923 = vunpack.c.h.b16 %v222
    %v924 = vunpack.c.l.b16 %v223
    %v925 = vunpack.c.h.b16 %v223
    %v926 = vunpack.c.l.b16 %v224
    %v927 = vunpack.c.h.b16 %v224
    %v928 = vunpack.c.l.b16 %v225
    %v929 = vunpack.c.h.b16 %v225
    %v930 = vunpack.c.l.b16 %v226
    %v931 = vunpack.c.h.b16 %v226
    %v932 = vunpack.c.l.b16 %v227
    %v933 = vunpack.c.h.b16 %v227
    %v934 = vunpack.c.l.b16 %v228
    %v935 = vunpack.c.h.b16 %v228
    %v936 = vunpack.c.l.b16 %v229
    %v937 = vunpack.c.h.b16 %v229
    %v938 = vunpack.c.l.b16 %v230
    %v939 = vunpack.c.h.b16 %v230
    %v940 = vunpack.c.l.b16 %v231
    %v941 = vunpack.c.h.b16 %v231
    %v942 = vunpack.c.l.b16 %v232
    %v943 = vunpack.c.h.b16 %v232
    %v944 = vunpack.c.l.b16 %v233
    %v945 = vunpack.c.h.b16 %v233
    %v946 = vunpack.c.l.b16 %v234
    %v947 = vunpack.c.h.b16 %v234
    %v948 = vunpack.c.l.b16 %v235
    %v949 = vunpack.c.h.b16 %v235
    %v950 = vunpack.c.l.b16 %v236
    %v951 = vunpack.c.h.b16 %v236
    %v952 = vunpack.c.l.b16 %v237
    %v953 = vunpack.c.h.b16 %v237
    %v954 = vunpack.c.l.b16 %v238
    %v955 = vunpack.c.h.b16 %v238
    %v956 = vunpack.c.l.b16 %v239
    %v957 = vunpack.c.h.b16 %v239
    %v958 = vunpack.c.l.b16 %v240
    %v959 = vunpack.c.h.b16 %v240
    %v960 = vunpack.c.l.b16 %v241
    %v961 = vunpack.c.h.b16 %v241
    %v962 = vunpack.c.l.b16 %v242
    %v963 = vunpack.c.h.b16 %v242
    %v964 = vunpack.c.l.b16 %v243
    %v965 = vunpack.c.h.b16 %v243
    %v966 = vunpack.c.l.b16 %v244
    %v967 = vunpack.c.h.b16 %v244
    %v968 = vunpack.c.l.b16 %v245
    %v969 = vunpack.c.h.b16 %v245
    %v970 = vunpack.c.l.b16 %v246
    %v971 = vunpack.c.h.b16 %v246
    %v972 = vunpack.c.l.b16 %v247
    %v973 = vunpack.c.h.b16 %v247
    %v974 = vunpack.c.l.b16 %v248
    %v975 = vunpack.c.h.b16 %v248
    %v976 = vunpack.c.l.b16 %v249
    %v977 = vunpack.c.h.b16 %v249
    %v978 = vunpack.c.l.b16 %v250
    %v979 = vunpack.c.h.b16 %v250
    %v980 = vunpack.c.l.b16 %v251
    %v981 = vunpack.c.h.b16 %v251
    %v982 = vunpack.c.l.b16 %v252
    %v983 = vunpack.c.h.b16 %v252
    %v984 = vunpack.c.l.b16 %v253
    %v985 = vunpack.c.h.b16 %v253
    %v986 = vunpack.c.l.b16 %v254
    %v987 = vunpack.c.h.b16 %v254
    %v988 = vunpack.c.l.b16 %v255
    %v989 = vunpack.c.h.b16 %v255
    %v990 = vunpack.c.l.b16 %v256
    %v991 = vunpack.c.h.b16 %v256
    %v992 = vunpack.c.l.b16 %v257
    %v993 = vunpack.c.h.b16 %v257
    %v994 = vunpack.c.l.b16 %v258
    %v995 = vunpack.c.h.b16 %v258
    %v996 = vunpack.c.l.b16 %v259
    %v997 = vunpack.c.h.b16 %v259
    %v998 = vunpack.c.l.b16 %v260
    %v999 = vunpack.c.h.b16 %v260
    %v1000 = vunpack.c.l.b16 %v261
    %v1001 = vunpack.c.h.b16 %v261
    %v1002 = vunpack.c.l.b16 %v262
    %v1003 = vunpack.c.h.b16 %v262
    %v1004 = vunpack.c.l.b16 %v263
    %v1005 = vunpack.c.h.b16 %v263
    %v1006 = vunpack.c.l.b16 %v264
    %v1007 = vunpack.c.h.b16 %v264
    %v1008 = vunpack.c.l.b16 %v265
    %v1009 = vunpack.c.h.b16 %v265
    %v1010 = vunpack.c.l.b16 %v266
    %v1011 = vunpack.c.h.b16 %v266
    %v1012 = vunpack.c.l.b16 %v267
    %v1013 = vunpack.c.h.b16 %v267
    %v1014 = vunpack.c.l.b16 %v268
    %v1015 = vunpack.c.h.b16 %v268
    %v1016 = vunpack.c.l.b16 %v269
    %v1017 = vunpack.c.h.b16 %v269
    %v1018 = vunpack.c.l.b16 %v270
    %v1019 = vunpack.c.h.b16 %v270
    %v1020 = vunpack.c.l.b16 %v271
    %v1021 = vunpack.c.h.b16 %v271
    %v1022 = vunpack.c.l.b16 %v272
    %v1023 = vunpack.c.h.b16 %v272
    %v1024 = vunpack.c.l.b16 %v273
    %v1025 = vunpack.c.h.b16 %v273
    %v1026 = vunpack.c.l.b16 %v274
    %v1027 = vunpack.c.h.b16 %v274
    %v1028 = vunpack.c.l.b16 %v275
    %v1029 = vunpack.c.h.b16 %v275
    %v1030 = vunpack.c.l.b16 %v276
    %v1031 = vunpack.c.h.b16 %v276
    %v1032 = vunpack.c.l.b16 %v277
    %v1033 = vunpack.c.h.b16 %v277
    %v1034 = vunpack.c.l.b16 %v278
    %v1035 = vunpack.c.h.b16 %v278
    %v1036 = vunpack.c.l.b16 %v279
    %v1037 = vunpack.c.h.b16 %v279
    %v1038 = vunpack.c.l.b16 %v280
    %v1039 = vunpack.c.h.b16 %v280
    %v1040 = vunpack.c.l.b16 %v281
    %v1041 = vunpack.c.h.b16 %v281
    %v1042 = vunpack.c.l.b16 %v282
    %v1043 = vunpack.c.h.b16 %v282
    %v1044 = vunpack.c.l.b16 %v283
    %v1045 = vunpack.c.h.b16 %v283
    %v1046 = vunpack.c.l.b16 %v284
    %v1047 = vunpack.c.h.b16 %v284
    %v1048 = vunpack.c.l.b16 %v285
    %v1049 = vunpack.c.h.b16 %v285
    %v1050 = vunpack.c.l.b16 %v286
    %v1051 = vunpack.c.h.b16 %v286
    %v1052 = vunpack.c.l.b16 %v287
    %v1053 = vunpack.c.h.b16 %v287
    %v1054 = vunpack.c.l.b16 %v288
    %v1055 = vunpack.c.h.b16 %v288
    %v1056 = vunpack.c.l.b16 %v289
    %v1057 = vunpack.c.h.b16 %v289
    %v1058 = vunpack.c.l.b16 %v290
    %v1059 = vunpack.c.h.b16 %v290
    %v1060 = vunpack.c.l.b16 %v291
    %v1061 = vunpack.c.h.b16 %v291
    %v1062 = vunpack.c.l.b16 %v292
    %v1063 = vunpack.c.h.b16 %v292
    %v1064 = vunpack.c.l.b16 %v293
    %v1065 = vunpack.c.h.b16 %v293
    %v1066 = vunpack.c.l.b16 %v294
    %v1067 = vunpack.c.h.b16 %v294
    %v1068 = vunpack.c.l.b16 %v295
    %v1069 = vunpack.c.h.b16 %v295
    %v1070 = vunpack.c.l.b16 %v296
    %v1071 = vunpack.c.h.b16 %v296
    %v1072 = vunpack.c.l.b16 %v297
    %v1073 = vunpack.c.h.b16 %v297
    %v1074 = vunpack.c.l.b16 %v298
    %v1075 = vunpack.c.h.b16 %v298
    %v1076 = vunpack.c.l.b16 %v299
    %v1077 = vunpack.c.h.b16 %v299
    %v1078 = vunpack.c.l.b16 %v300
    %v1079 = vunpack.c.h.b16 %v300
    %v1080 = vunpack.c.l.b16 %v301
    %v1081 = vunpack.c.h.b16 %v301
    %v1082 = vunpack.c.l.b16 %v302
    %v1083 = vunpack.c.h.b16 %v302
    %v1084 = vunpack.c.l.b16 %v303
    %v1085 = vunpack.c.h.b16 %v303
    %v1086 = vunpack.c.l.b16 %v304
    %v1087 = vunpack.c.h.b16 %v304
    %v1088 = vunpack.c.l.b16 %v305
    %v1089 = vunpack.c.h.b16 %v305
    %v1090 = vunpack.c.l.b16 %v306
    %v1091 = vunpack.c.h.b16 %v306
    %v1092 = vunpack.c.l.b16 %v307
    %v1093 = vunpack.c.h.b16 %v307
    %v1094 = vunpack.c.l.b16 %v308
    %v1095 = vunpack.c.h.b16 %v308
    %v1096 = vunpack.c.l.b16 %v309
    %v1097 = vunpack.c.h.b16 %v309
    %v1098 = vunpack.c.l.b16 %v310
    %v1099 = vunpack.c.h.b16 %v310
    %v1100 = vunpack.c.l.b16 %v311
    %v1101 = vunpack.c.h.b16 %v311
    %v1102 = vunpack.c.l.b16 %v312
    %v1103 = vunpack.c.h.b16 %v312
    %v1104 = vunpack.c.l.b16 %v313
    %v1105 = vunpack.c.h.b16 %v313
    %v1106 = vunpack.c.l.b16 %v314
    %v1107 = vunpack.c.h.b16 %v314
    %v1108 = vunpack.c.l.b16 %v315
    %v1109 = vunpack.c.h.b16 %v315
    %v1110 = vunpack.c.l.b16 %v316
    %v1111 = vunpack.c.h.b16 %v316
    %v1112 = vunpack.c.l.b16 %v317
    %v1113 = vunpack.c.h.b16 %v317
    %v1114 = vunpack.c.l.b16 %v318
    %v1115 = vunpack.c.h.b16 %v318
    %v1116 = vunpack.c.l.b16 %v319
    %v1117 = vunpack.c.h.b16 %v319
    %v1118 = vunpack.c.l.b16 %v320
    %v1119 = vunpack.c.h.b16 %v320
    %v1120 = vunpack.c.l.b16 %v321
    %v1121 = vunpack.c.h.b16 %v321
    %v1122 = vunpack.c.l.b16 %v322
    %v1123 = vunpack.c.h.b16 %v322
    %v1124 = vunpack.c.l.b16 %v323
    %v1125 = vunpack.c.h.b16 %v323
    %v1126 = vunpack.c.l.b16 %v324
    %v1127 = vunpack.c.h.b16 %v324
    %v1128 = vunpack.c.l.b16 %v325
    %v1129 = vunpack.c.h.b16 %v325
    %v1130 = vunpack.c.l.b16 %v326
    %v1131 = vunpack.c.h.b16 %v326
    %v1132 = vunpack.c.l.b16 %v327
    %v1133 = vunpack.c.h.b16 %v327
    %v1134 = vunpack.c.l.b16 %v328
    %v1135 = vunpack.c.h.b16 %v328
    %v1136 = vunpack.c.l.b16 %v329
    %v1137 = vunpack.c.h.b16 %v329
    %v1138 = vunpack.c.l.b16 %v330
    %v1139 = vunpack.c.h.b16 %v330
    %v1140 = vunpack.c.l.b16 %v331
    %v1141 = vunpack.c.h.b16 %v331
    %v1142 = vunpack.c.l.b16 %v332
    %v1143 = vunpack.c.h.b16 %v332
    %v1144 = vunpack.c.l.b16 %v333
    %v1145 = vunpack.c.h.b16 %v333
    %v1146 = vunpack.c.l.b16 %v334
    %v1147 = vunpack.c.h.b16 %v334
    %v1148 = vunpack.c.l.b16 %v335
    %v1149 = vunpack.c.h.b16 %v335
    %v1150 = vunpack.c.l.b16 %v336
    %v1151 = vunpack.c.h.b16 %v336
    %v1152 = vunpack.c.l.b16 %v337
    %v1153 = vunpack.c.h.b16 %v337
    %v1154 = vunpack.c.l.b16 %v338
    %v1155 = vunpack.c.h.b16 %v338
    %v1156 = vunpack.c.l.b16 %v339
    %v1157 = vunpack.c.h.b16 %v339
    %v1158 = vpack.c.b16 %v650, %v646
    %v1159 = vpack.c.b16 %v651, %v647
    %v1160 = vpack.c.b16 %v652, %v648
    %v1161 = vpack.c.b16 %v653, %v649
    %v1162 = vpack.c.b16 %v658, %v654
    %v1163 = vpack.c.b16 %v659, %v655
    %v1164 = vpack.c.b16 %v660, %v656
    %v1165 = vpack.c.b16 %v661, %v657
    %v1166 = vpack.c.b16 %v666, %v662
    %v1167 = vpack.c.b16 %v667, %v663
    %v1168 = vpack.c.b16 %v668, %v664
    %v1169 = vpack.c.b16 %v669, %v665
    %v1170 = vpack.c.b16 %v674, %v670
    %v1171 = vpack.c.b16 %v675, %v671
    %v1172 = vpack.c.b16 %v676, %v672
    %v1173 = vpack.c.b16 %v677, %v673
    %v1174 = vpack.c.b16 %v682, %v678
    %v1175 = vpack.c.b16 %v683, %v679
    %v1176 = vpack.c.b16 %v684, %v680
    %v1177 = vpack.c.b16 %v685, %v681
    %v1178 = vpack.c.b16 %v690, %v686
    %v1179 = vpack.c.b16 %v691, %v687
    %v1180 = vpack.c.b16 %v692, %v688
    %v1181 = vpack.c.b16 %v693, %v689
    %v1182 = vpack.c.b16 %v698, %v694
    %v1183 = vpack.c.b16 %v699, %v695
    %v1184 = vpack.c.b16 %v700, %v696
    %v1185 = vpack.c.b16 %v701, %v697
    %v1186 = vpack.c.b16 %v706, %v702
    %v1187 = vpack.c.b16 %v707, %v703
    %v1188 = vpack.c.b16 %v708, %v704
    %v1189 = vpack.c.b16 %v709, %v705
    %v1190 = vpack.c.b16 %v714, %v710
    %v1191 = vpack.c.b16 %v715, %v711
    %v1192 = vpack.c.b16 %v716, %v712
    %v1193 = vpack.c.b16 %v717, %v713
    %v1194 = vpack.c.b16 %v722, %v718
    %v1195 = vpack.c.b16 %v723, %v719
    %v1196 = vpack.c.b16 %v724, %v720
    %v1197 = vpack.c.b16 %v725, %v721
    %v1198 = vpack.c.b16 %v730, %v726
    %v1199 = vpack.c.b16 %v731, %v727
    %v1200 = vpack.c.b16 %v732, %v728
    %v1201 = vpack.c.b16 %v733, %v729
    %v1202 = vpack.c.b16 %v738, %v734
    %v1203 = vpack.c.b16 %v739, %v735
    %v1204 = vpack.c.b16 %v740, %v736
    %v1205 = vpack.c.b16 %v741, %v737
    %v1206 = vpack.c.b16 %v746, %v742
    %v1207 = vpack.c.b16 %v747, %v743
    %v1208 = vpack.c.b16 %v748, %v744
    %v1209 = vpack.c.b16 %v749, %v745
    %v1210 = vpack.c.b16 %v754, %v750
    %v1211 = vpack.c.b16 %v755, %v751
    %v1212 = vpack.c.b16 %v756, %v752
    %v1213 = vpack.c.b16 %v757, %v753
    %v1214 = vpack.c.b16 %v762, %v758
    %v1215 = vpack.c.b16 %v763, %v759
    %v1216 = vpack.c.b16 %v764, %v760
    %v1217 = vpack.c.b16 %v765, %v761
    %v1218 = vpack.c.b16 %v770, %v766
    %v1219 = vpack.c.b16 %v771, %v767
    %v1220 = vpack.c.b16 %v772, %v768
    %v1221 = vpack.c.b16 %v773, %v769
    %v1222 = vpack.c.b16 %v778, %v774
    %v1223 = vpack.c.b16 %v779, %v775
    %v1224 = vpack.c.b16 %v780, %v776
    %v1225 = vpack.c.b16 %v781, %v777
    %v1226 = vpack.c.b16 %v786, %v782
    %v1227 = vpack.c.b16 %v787, %v783
    %v1228 = vpack.c.b16 %v788, %v784
    %v1229 = vpack.c.b16 %v789, %v785
    %v1230 = vpack.c.b16 %v794, %v790
    %v1231 = vpack.c.b16 %v795, %v791
    %v1232 = vpack.c.b16 %v796, %v792
    %v1233 = vpack.c.b16 %v797, %v793
    %v1234 = vpack.c.b16 %v802, %v798
    %v1235 = vpack.c.b16 %v803, %v799
    %v1236 = vpack.c.b16 %v804, %v800
    %v1237 = vpack.c.b16 %v805, %v801
    %v1238 = vpack.c.b16 %v810, %v806
    %v1239 = vpack.c.b16 %v811, %v807
    %v1240 = vpack.c.b16 %v812, %v808
    %v1241 = vpack.c.b16 %v813, %v809
    %v1242 = vpack.c.b16 %v818, %v814
    %v1243 = vpack.c.b16 %v819, %v815
    %v1244 = vpack.c.b16 %v820, %v816
    %v1245 = vpack.c.b16 %v821, %v817
    %v1246 = vpack.c.b16 %v826, %v822
    %v1247 = vpack.c.b16 %v827, %v823
    %v1248 = vpack.c.b16 %v828, %v824
    %v1249 = vpack.c.b16 %v829, %v825
    %v1250 = vpack.c.b16 %v834, %v830
    %v1251 = vpack.c.b16 %v835, %v831
    %v1252 = vpack.c.b16 %v836, %v832
    %v1253 = vpack.c.b16 %v837, %v833
    %v1254 = vpack.c.b16 %v842, %v838
    %v1255 = vpack.c.b16 %v843, %v839
    %v1256 = vpack.c.b16 %v844, %v840
    %v1257 = vpack.c.b16 %v845, %v841
    %v1258 = vpack.c.b16 %v850, %v846
    %v1259 = vpack.c.b16 %v851, %v847
    %v1260 = vpack.c.b16 %v852, %v848
    %v1261 = vpack.c.b16 %v853, %v849
    %v1262 = vpack.c.b16 %v858, %v854
    %v1263 = vpack.c.b16 %v859, %v855
    %v1264 = vpack.c.b16 %v860, %v856
    %v1265 = vpack.c.b16 %v861, %v857
    %v1266 = vpack.c.b16 %v866, %v862
    %v1267 = vpack.c.b16 %v867, %v863
    %v1268 = vpack.c.b16 %v868, %v864
    %v1269 = vpack.c.b16 %v869, %v865
    %v1270 = vpack.c.b16 %v874, %v870
    %v1271 = vpack.c.b16 %v875, %v871
    %v1272 = vpack.c.b16 %v876, %v872
    %v1273 = vpack.c.b16 %v877, %v873
    %v1274 = vpack.c.b16 %v882, %v878
    %v1275 = vpack.c.b16 %v883, %v879
    %v1276 = vpack.c.b16 %v884, %v880
    %v1277 = vpack.c.b16 %v885, %v881
    %v1278 = vpack.c.b16 %v890, %v886
    %v1279 = vpack.c.b16 %v891, %v887
    %v1280 = vpack.c.b16 %v892, %v888
    %v1281 = vpack.c.b16 %v893, %v889
    %v1282 = vpack.c.b16 %v898, %v894
    %v1283 = vpack.c.b16 %v899, %v895
    %v1284 = vpack.c.b16 %v900, %v896
    %v1285 = vpack.c.b16 %v901, %v897
    %v1286 = vpack.c.b16 %v906, %v902
    %v1287 = vpack.c.b16 %v907, %v903
    %v1288 = vpack.c.b16 %v908, %v904
    %v1289 = vpack.c.b16 %v909, %v905
    %v1290 = vpack.c.b16 %v914, %v910
    %v1291 = vpack.c.b16 %v915, %v911
    %v1292 = vpack.c.b16 %v916, %v912
    %v1293 = vpack.c.b16 %v917, %v913
    %v1294 = vpack.c.b16 %v922, %v918
    %v1295 = vpack.c.b16 %v923, %v919
    %v1296 = vpack.c.b16 %v924, %v920
    %v1297 = vpack.c.b16 %v925, %v921
    %v1298 = vpack.c.b16 %v930, %v926
    %v1299 = vpack.c.b16 %v931, %v927
    %v1300 = vpack.c.b16 %v932, %v928
    %v1301 = vpack.c.b16 %v933, %v929
    %v1302 = vpack.c.b16 %v938, %v934
    %v1303 = vpack.c.b16 %v939, %v935
    %v1304 = vpack.c.b16 %v940, %v936
    %v1305 = vpack.c.b16 %v941, %v937
    %v1306 = vpack.c.b16 %v946, %v942
    %v1307 = vpack.c.b16 %v947, %v943
    %v1308 = vpack.c.b16 %v948, %v944
    %v1309 = vpack.c.b16 %v949, %v945
    %v1310 = vpack.c.b16 %v954, %v950
    %v1311 = vpack.c.b16 %v955, %v951
    %v1312 = vpack.c.b16 %v956, %v952
    %v1313 = vpack.c.b16 %v957, %v953
    %v1314 = vpack.c.b16 %v962, %v958
    %v1315 = vpack.c.b16 %v963, %v959
    %v1316 = vpack.c.b16 %v964, %v960
    %v1317 = vpack.c.b16 %v965, %v961
    %v1318 = vpack.c.b16 %v970, %v966
    %v1319 = vpack.c.b16 %v971, %v967
    %v1320 = vpack.c.b16 %v972, %v968
    %v1321 = vpack.c.b16 %v973, %v969
    %v1322 = vpack.c.b16 %v978, %v974
    %v1323 = vpack.c.b16 %v979, %v975
    %v1324 = vpack.c.b16 %v980, %v976
    %v1325 = vpack.c.b16 %v981, %v977
    %v1326 = vpack.c.b16 %v986, %v982
    %v1327 = vpack.c.b16 %v987, %v983
    %v1328 = vpack.c.b16 %v988, %v984
    %v1329 = vpack.c.b16 %v989, %v985
    %v1330 = vpack.c.b16 %v994, %v990
    %v1331 = vpack.c.b16 %v995, %v991
    %v1332 = vpack.c.b16 %v996, %v992
    %v1333 = vpack.c.b16 %v997, %v993
    %v1334 = vpack.c.b16 %v1002, %v998
    %v1335 = vpack.c.b16 %v1003, %v999
    %v1336 = vpack.c.b16 %v1004, %v1000
    %v1337 = vpack.c.b16 %v1005, %v1001
    %v1338 = vpack.c.b16 %v1010, %v1006
    %v1339 = vpack.c.b16 %v1011, %v1007
    %v1340 = vpack.c.b16 %v1012, %v1008
    %v1341 = vpack.c.b16 %v1013, %v1009
    %v1342 = vpack.c.b16 %v1018, %v1014
    %v1343 = vpack.c.b16 %v1019, %v1015
    %v1344 = vpack.c.b16 %v1020, %v1016
    %v1345 = vpack.c.b16 %v1021, %v1017
    %v1346 = vpack.c.b16 %v1026, %v1022
    %v1347 = vpack.c.b16 %v1027, %v1023
    %v1348 = vpack.c.b16 %v1028, %v1024
    %v1349 = vpack.c.b16 %v1029, %v1025
    %v1350 = vpack.c.b16 %v1034, %v1030
    %v1351 = vpack.c.b16 %v1035, %v1031
    %v1352 = vpack.c.b16 %v1036, %v1032
    %v1353 = vpack.c.b16 %v1037, %v1033
    %v1354 = vpack.c.b16 %v1042, %v1038
    %v1355 = vpack.c.b16 %v1043, %v1039
    %v1356 = vpack.c.b16 %v1044, %v1040
    %v1357 = vpack.c.b16 %v1045, %v1041
    %v1358 = vpack.c.b16 %v1050, %v1046
    %v1359 = vpack.c.b16 %v1051, %v1047
    %v1360 = vpack.c.b16 %v1052, %v1048
    %v1361 = vpack.c.b16 %v1053, %v1049
    %v1362 = vpack.c.b16 %v1058, %v1054
    %v1363 = vpack.c.b16 %v1059, %v1055
    %v1364 = vpack.c.b16 %v1060, %v1056
    %v1365 = vpack.c.b16 %v1061, %v1057
    %v1366 = vpack.c.b16 %v1066, %v1062
    %v1367 = vpack.c.b16 %v1067, %v1063
    %v1368 = vpack.c.b16 %v1068, %v1064
    %v1369 = vpack.c.b16 %v1069, %v1065
    %v1370 = vpack.c.b16 %v1074, %v1070
    %v1371 = vpack.c.b16 %v1075, %v1071
    %v1372 = vpack.c.b16 %v1076, %v1072
    %v1373 = vpack.c.b16 %v1077, %v1073
    %v1374 = vpack.c.b16 %v1082, %v1078
    %v1375 = vpack.c.b16 %v1083, %v1079
    %v1376 = vpack.c.b16 %v1084, %v1080
    %v1377 = vpack.c.b16 %v1085, %v1081
    %v1378 = vpack.c.b16 %v1090, %v1086
    %v1379 = vpack.c.b16 %v1091, %v1087
    %v1380 = vpack.c.b16 %v1092, %v1088
    %v1381 = vpack.c.b16 %v1093, %v1089
    %v1382 = vpack.c.b16 %v1098, %v1094
    %v1383 = vpack.c.b16 %v1099, %v1095
    %v1384 = vpack.c.b16 %v1100, %v1096
    %v1385 = vpack.c.b16 %v1101, %v1097
    %v1386 = vpack.c.b16 %v1106, %v1102
    %v1387 = vpack.c.b16 %v1107, %v1103
    %v1388 = vpack.c.b16 %v1108, %v1104
    %v1389 = vpack.c.b16 %v1109, %v1105
    %v1390 = vpack.c.b16 %v1114, %v1110
    %v1391 = vpack.c.b16 %v1115, %v1111
    %v1392 = vpack.c.b16 %v1116, %v1112
    %v1393 = vpack.c.b16 %v1117, %v1113
    %v1394 = vpack.c.b16 %v1122, %v1118
    %v1395 = vpack.c.b16 %v1123, %v1119
    %v1396 = vpack.c.b16 %v1124, %v1120
    %v1397 = vpack.c.b16 %v1125, %v1121
    %v1398 = vpack.c.b16 %v1130, %v1126
    %v1399 = vpack.c.b16 %v1131, %v1127
    %v1400 = vpack.c.b16 %v1132, %v1128
    %v1401 = vpack.c.b16 %v1133, %v1129
    %v1402 = vpack.c.b16 %v1138, %v1134
    %v1403 = vpack.c.b16 %v1139, %v1135
    %v1404 = vpack.c.b16 %v1140, %v1136
    %v1405 = vpack.c.b16 %v1141, %v1137
    %v1406 = vpack.c.b16 %v1146, %v1142
    %v1407 = vpack.c.b16 %v1147, %v1143
    %v1408 = vpack.c.b16 %v1148, %v1144
    %v1409 = vpack.c.b16 %v1149, %v1145
    %v1410 = vpack.c.b16 %v1154, %v1150
    %v1411 = vpack.c.b16 %v1155, %v1151
    %v1412 = vpack.c.b16 %v1156, %v1152
    %v1413 = vpack.c.b16 %v1157, %v1153
    %1670 = vmatprep.subr.bf16.mxu0 %v1159
    %1671 = vmatpush1.bf16.msra.mxu0 %v1158
    %1672 = vmatprep.subr.bf16.mxu0 %v1163
    %1673 = vmatpush1.bf16.msra.mxu0 %v1162
    %1674 = vmatprep.subr.bf16.mxu0 %v1167
    %1675 = vmatpush1.bf16.msra.mxu0 %v1166
    %1676 = vmatprep.subr.bf16.mxu0 %v1171
    %1677 = vmatpush1.bf16.msra.mxu0 %v1170
    %1678 = vmatprep.subr.bf16.mxu0 %v1175
    %1679 = vmatpush1.bf16.msra.mxu0 %v1174
    %1680 = vmatprep.subr.bf16.mxu0 %v1179
    %1681 = vmatpush1.bf16.msra.mxu0 %v1178
    %1682 = vmatprep.subr.bf16.mxu0 %v1183
    %1683 = vmatpush1.bf16.msra.mxu0 %v1182
    %1684 = vmatprep.subr.bf16.mxu0 %v1187
    %1685 = vmatpush1.bf16.msra.mxu0 %v1186
    %1686 = vmatprep.subr.bf16.mxu0 %v1191
    %1687 = vmatpush1.bf16.msra.mxu0 %v1190
    %1688 = vmatprep.subr.bf16.mxu0 %v1195
    %1689 = vmatpush1.bf16.msra.mxu0 %v1194
    %1690 = vmatprep.subr.bf16.mxu0 %v1199
    %1691 = vmatpush1.bf16.msra.mxu0 %v1198
    %1692 = vmatprep.subr.bf16.mxu0 %v1203
    %1693 = vmatpush1.bf16.msra.mxu0 %v1202
    %1694 = vmatprep.subr.bf16.mxu0 %v1207
    %1695 = vmatpush1.bf16.msra.mxu0 %v1206
    %1696 = vmatprep.subr.bf16.mxu0 %v1211
    %1697 = vmatpush1.bf16.msra.mxu0 %v1210
    %1698 = vmatprep.subr.bf16.mxu0 %v1215
    %1699 = vmatpush1.bf16.msra.mxu0 %v1214
    %1700 = vmatprep.subr.bf16.mxu0 %v1219
    %1701 = vmatpush1.bf16.msra.mxu0 %v1218
    %1702 = vmatprep.mubr.bf16.mxu0 %v375
    %1703 = vmatmul.mubr.bf16.gmra.mrb[0].mxu0 %v374
    %v1704 = vpop.f32.mrb[0].mxu0
    %v1705 = vadd.f32 %v345, %v1704
    %v1706 = vpop.f32.mrb[0].mxu0
    %v1707 = vadd.f32 %v349, %v1706
    %v1708 = vpop.f32.mrb[0].mxu0
    %v1709 = vpop.f32.mrb[0].mxu0
    %1710 = vdwg.mxu0
    %1711 = vmatprep.subr.bf16.mxu0 %v1223
    %1712 = vmatpush1.bf16.msra.mxu0 %v1222
    %1713 = vmatprep.subr.bf16.mxu0 %v1227
    %1714 = vmatpush1.bf16.msra.mxu0 %v1226
    %1715 = vmatprep.subr.bf16.mxu0 %v1231
    %1716 = vmatpush1.bf16.msra.mxu0 %v1230
    %1717 = vmatprep.subr.bf16.mxu0 %v1235
    %1718 = vmatpush1.bf16.msra.mxu0 %v1234
    %1719 = vmatprep.subr.bf16.mxu0 %v1239
    %1720 = vmatpush1.bf16.msra.mxu0 %v1238
    %1721 = vmatprep.subr.bf16.mxu0 %v1243
    %1722 = vmatpush1.bf16.msra.mxu0 %v1242
    %1723 = vmatprep.subr.bf16.mxu0 %v1247
    %1724 = vmatpush1.bf16.msra.mxu0 %v1246
    %1725 = vmatprep.subr.bf16.mxu0 %v1251
    %1726 = vmatpush1.bf16.msra.mxu0 %v1250
    %1727 = vmatprep.subr.bf16.mxu0 %v1255
    %1728 = vmatpush1.bf16.msra.mxu0 %v1254
    %1729 = vmatprep.subr.bf16.mxu0 %v1259
    %1730 = vmatpush1.bf16.msra.mxu0 %v1258
    %1731 = vmatprep.subr.bf16.mxu0 %v1263
    %1732 = vmatpush1.bf16.msra.mxu0 %v1262
    %1733 = vmatprep.subr.bf16.mxu0 %v1267
    %1734 = vmatpush1.bf16.msra.mxu0 %v1266
    %1735 = vmatprep.subr.bf16.mxu0 %v1271
    %1736 = vmatpush1.bf16.msra.mxu0 %v1270
    %1737 = vmatprep.subr.bf16.mxu0 %v1275
    %1738 = vmatpush1.bf16.msra.mxu0 %v1274
    %1739 = vmatprep.subr.bf16.mxu0 %v1279
    %1740 = vmatpush1.bf16.msra.mxu0 %v1278
    %1741 = vmatprep.subr.bf16.mxu0 %v1283
    %1742 = vmatpush1.bf16.msra.mxu0 %v1282
    %1743 = vmatprep.mubr.bf16.mxu0 %v377
    %1744 = vmatmul.mubr.bf16.gmra.mrb[0].mxu0 %v376
    %v1745 = vpop.f32.mrb[0].mxu0
    %v1746 = vadd.f32 %v1705, %v1745
    %v1747 = vpop.f32.mrb[0].mxu0
    %v1748 = vadd.f32 %v1707, %v1747
    %v1749 = vpop.f32.mrb[0].mxu0
    %v1750 = vpop.f32.mrb[0].mxu0
    %1751 = vdwg.mxu0
    %1752 = vmatprep.subr.bf16.mxu0 %v1287
    %1753 = vmatpush1.bf16.msra.mxu0 %v1286
    %1754 = vmatprep.subr.bf16.mxu0 %v1291
    %1755 = vmatpush1.bf16.msra.mxu0 %v1290
    %1756 = vmatprep.subr.bf16.mxu0 %v1295
    %1757 = vmatpush1.bf16.msra.mxu0 %v1294
    %1758 = vmatprep.subr.bf16.mxu0 %v1299
    %1759 = vmatpush1.bf16.msra.mxu0 %v1298
    %1760 = vmatprep.subr.bf16.mxu0 %v1303
    %1761 = vmatpush1.bf16.msra.mxu0 %v1302
    %1762 = vmatprep.subr.bf16.mxu0 %v1307
    %1763 = vmatpush1.bf16.msra.mxu0 %v1306
    %1764 = vmatprep.subr.bf16.mxu0 %v1311
    %1765 = vmatpush1.bf16.msra.mxu0 %v1310
    %1766 = vmatprep.subr.bf16.mxu0 %v1315
    %1767 = vmatpush1.bf16.msra.mxu0 %v1314
    %1768 = vmatprep.subr.bf16.mxu0 %v1319
    %1769 = vmatpush1.bf16.msra.mxu0 %v1318
    %1770 = vmatprep.subr.bf16.mxu0 %v1323
    %1771 = vmatpush1.bf16.msra.mxu0 %v1322
    %1772 = vmatprep.subr.bf16.mxu0 %v1327
    %1773 = vmatpush1.bf16.msra.mxu0 %v1326
    %1774 = vmatprep.subr.bf16.mxu0 %v1331
    %1775 = vmatpush1.bf16.msra.mxu0 %v1330
    %1776 = vmatprep.subr.bf16.mxu0 %v1335
    %1777 = vmatpush1.bf16.msra.mxu0 %v1334
    %1778 = vmatprep.subr.bf16.mxu0 %v1339
    %1779 = vmatpush1.bf16.msra.mxu0 %v1338
    %1780 = vmatprep.subr.bf16.mxu0 %v1343
    %1781 = vmatpush1.bf16.msra.mxu0 %v1342
    %1782 = vmatprep.subr.bf16.mxu0 %v1347
    %1783 = vmatpush1.bf16.msra.mxu0 %v1346
    %1784 = vmatprep.mubr.bf16.mxu0 %v379
    %1785 = vmatmul.mubr.bf16.gmra.mrb[0].mxu0 %v378
    %v1786 = vpop.f32.mrb[0].mxu0
    %v1787 = vadd.f32 %v1746, %v1786
    %v1788 = vpop.f32.mrb[0].mxu0
    %v1789 = vadd.f32 %v1748, %v1788
    %v1790 = vpop.f32.mrb[0].mxu0
    %v1791 = vpop.f32.mrb[0].mxu0
    %1792 = vdwg.mxu0
    %1793 = vmatprep.subr.bf16.mxu0 %v1351
    %1794 = vmatpush1.bf16.msra.mxu0 %v1350
    %1795 = vmatprep.subr.bf16.mxu0 %v1355
    %1796 = vmatpush1.bf16.msra.mxu0 %v1354
    %1797 = vmatprep.subr.bf16.mxu0 %v1359
    %1798 = vmatpush1.bf16.msra.mxu0 %v1358
    %1799 = vmatprep.subr.bf16.mxu0 %v1363
    %1800 = vmatpush1.bf16.msra.mxu0 %v1362
    %1801 = vmatprep.subr.bf16.mxu0 %v1367
    %1802 = vmatpush1.bf16.msra.mxu0 %v1366
    %1803 = vmatprep.subr.bf16.mxu0 %v1371
    %1804 = vmatpush1.bf16.msra.mxu0 %v1370
    %1805 = vmatprep.subr.bf16.mxu0 %v1375
    %1806 = vmatpush1.bf16.msra.mxu0 %v1374
    %1807 = vmatprep.subr.bf16.mxu0 %v1379
    %1808 = vmatpush1.bf16.msra.mxu0 %v1378
    %1809 = vmatprep.subr.bf16.mxu0 %v1383
    %1810 = vmatpush1.bf16.msra.mxu0 %v1382
    %1811 = vmatprep.subr.bf16.mxu0 %v1387
    %1812 = vmatpush1.bf16.msra.mxu0 %v1386
    %1813 = vmatprep.subr.bf16.mxu0 %v1391
    %1814 = vmatpush1.bf16.msra.mxu0 %v1390
    %1815 = vmatprep.subr.bf16.mxu0 %v1395
    %1816 = vmatpush1.bf16.msra.mxu0 %v1394
    %1817 = vmatprep.subr.bf16.mxu0 %v1399
    %1818 = vmatpush1.bf16.msra.mxu0 %v1398
    %1819 = vmatprep.subr.bf16.mxu0 %v1403
    %1820 = vmatpush1.bf16.msra.mxu0 %v1402
    %1821 = vmatprep.subr.bf16.mxu0 %v1407
    %1822 = vmatpush1.bf16.msra.mxu0 %v1406
    %1823 = vmatprep.subr.bf16.mxu0 %v1411
    %1824 = vmatpush1.bf16.msra.mxu0 %v1410
    %1825 = vmatprep.mubr.bf16.mxu0 %v381
    %1826 = vmatmul.mubr.bf16.gmra.mrb[0].mxu0 %v380
    %v1827 = vpop.f32.mrb[0].mxu0
    %v1828 = vadd.f32 %v1787, %v1827
    %v1829 = vpop.f32.mrb[0].mxu0
    %v1830 = vadd.f32 %v1789, %v1829
    %v1831 = vpop.f32.mrb[0].mxu0
    %v1832 = vpop.f32.mrb[0].mxu0
    %1833 = vdwg.mxu0
    %1834 = vmatprep.subr.bf16.mxu0 %v1161
    %1835 = vmatpush1.bf16.msra.mxu0 %v1160
    %1836 = vmatprep.subr.bf16.mxu0 %v1165
    %1837 = vmatpush1.bf16.msra.mxu0 %v1164
    %1838 = vmatprep.subr.bf16.mxu0 %v1169
    %1839 = vmatpush1.bf16.msra.mxu0 %v1168
    %1840 = vmatprep.subr.bf16.mxu0 %v1173
    %1841 = vmatpush1.bf16.msra.mxu0 %v1172
    %1842 = vmatprep.subr.bf16.mxu0 %v1177
    %1843 = vmatpush1.bf16.msra.mxu0 %v1176
    %1844 = vmatprep.subr.bf16.mxu0 %v1181
    %1845 = vmatpush1.bf16.msra.mxu0 %v1180
    %1846 = vmatprep.subr.bf16.mxu0 %v1185
    %1847 = vmatpush1.bf16.msra.mxu0 %v1184
    %1848 = vmatprep.subr.bf16.mxu0 %v1189
    %1849 = vmatpush1.bf16.msra.mxu0 %v1188
    %1850 = vmatprep.subr.bf16.mxu0 %v1193
    %1851 = vmatpush1.bf16.msra.mxu0 %v1192
    %1852 = vmatprep.subr.bf16.mxu0 %v1197
    %1853 = vmatpush1.bf16.msra.mxu0 %v1196
    %1854 = vmatprep.subr.bf16.mxu0 %v1201
    %1855 = vmatpush1.bf16.msra.mxu0 %v1200
    %1856 = vmatprep.subr.bf16.mxu0 %v1205
    %1857 = vmatpush1.bf16.msra.mxu0 %v1204
    %1858 = vmatprep.subr.bf16.mxu0 %v1209
    %1859 = vmatpush1.bf16.msra.mxu0 %v1208
    %1860 = vmatprep.subr.bf16.mxu0 %v1213
    %1861 = vmatpush1.bf16.msra.mxu0 %v1212
    %1862 = vmatprep.subr.bf16.mxu0 %v1217
    %1863 = vmatpush1.bf16.msra.mxu0 %v1216
    %1864 = vmatprep.subr.bf16.mxu0 %v1221
    %1865 = vmatpush1.bf16.msra.mxu0 %v1220
    %1866 = vmatprep.mubr.bf16.mxu0 %v375
    %1867 = vmatmul.mubr.bf16.gmra.mrb[0].mxu0 %v374
    %v1868 = vpop.f32.mrb[0].mxu0
    %v1869 = vadd.f32 %v353, %v1868
    %v1870 = vpop.f32.mrb[0].mxu0
    %v1871 = vadd.f32 %v357, %v1870
    %v1872 = vpop.f32.mrb[0].mxu0
    %v1873 = vpop.f32.mrb[0].mxu0
    %1874 = vdwg.mxu0
    %1875 = vmatprep.subr.bf16.mxu0 %v1225
    %1876 = vmatpush1.bf16.msra.mxu0 %v1224
    %1877 = vmatprep.subr.bf16.mxu0 %v1229
    %1878 = vmatpush1.bf16.msra.mxu0 %v1228
    %1879 = vmatprep.subr.bf16.mxu0 %v1233
    %1880 = vmatpush1.bf16.msra.mxu0 %v1232
    %1881 = vmatprep.subr.bf16.mxu0 %v1237
    %1882 = vmatpush1.bf16.msra.mxu0 %v1236
    %1883 = vmatprep.subr.bf16.mxu0 %v1241
    %1884 = vmatpush1.bf16.msra.mxu0 %v1240
    %1885 = vmatprep.subr.bf16.mxu0 %v1245
    %1886 = vmatpush1.bf16.msra.mxu0 %v1244
    %1887 = vmatprep.subr.bf16.mxu0 %v1249
    %1888 = vmatpush1.bf16.msra.mxu0 %v1248
    %1889 = vmatprep.subr.bf16.mxu0 %v1253
    %1890 = vmatpush1.bf16.msra.mxu0 %v1252
    %1891 = vmatprep.subr.bf16.mxu0 %v1257
    %1892 = vmatpush1.bf16.msra.mxu0 %v1256
    %1893 = vmatprep.subr.bf16.mxu0 %v1261
    %1894 = vmatpush1.bf16.msra.mxu0 %v1260
    %1895 = vmatprep.subr.bf16.mxu0 %v1265
    %1896 = vmatpush1.bf16.msra.mxu0 %v1264
    %1897 = vmatprep.subr.bf16.mxu0 %v1269
    %1898 = vmatpush1.bf16.msra.mxu0 %v1268
    %1899 = vmatprep.subr.bf16.mxu0 %v1273
    %1900 = vmatpush1.bf16.msra.mxu0 %v1272
    %1901 = vmatprep.subr.bf16.mxu0 %v1277
    %1902 = vmatpush1.bf16.msra.mxu0 %v1276
    %1903 = vmatprep.subr.bf16.mxu0 %v1281
    %1904 = vmatpush1.bf16.msra.mxu0 %v1280
    %1905 = vmatprep.subr.bf16.mxu0 %v1285
    %1906 = vmatpush1.bf16.msra.mxu0 %v1284
    %1907 = vmatprep.mubr.bf16.mxu0 %v377
    %1908 = vmatmul.mubr.bf16.gmra.mrb[0].mxu0 %v376
    %v1909 = vpop.f32.mrb[0].mxu0
    %v1910 = vadd.f32 %v1869, %v1909
    %v1911 = vpop.f32.mrb[0].mxu0
    %v1912 = vadd.f32 %v1871, %v1911
    %v1913 = vpop.f32.mrb[0].mxu0
    %v1914 = vpop.f32.mrb[0].mxu0
    %1915 = vdwg.mxu0
    %1916 = vmatprep.subr.bf16.mxu0 %v1289
    %1917 = vmatpush1.bf16.msra.mxu0 %v1288
    %1918 = vmatprep.subr.bf16.mxu0 %v1293
    %1919 = vmatpush1.bf16.msra.mxu0 %v1292
    %1920 = vmatprep.subr.bf16.mxu0 %v1297
    %1921 = vmatpush1.bf16.msra.mxu0 %v1296
    %1922 = vmatprep.subr.bf16.mxu0 %v1301
    %1923 = vmatpush1.bf16.msra.mxu0 %v1300
    %1924 = vmatprep.subr.bf16.mxu0 %v1305
    %1925 = vmatpush1.bf16.msra.mxu0 %v1304
    %1926 = vmatprep.subr.bf16.mxu0 %v1309
    %1927 = vmatpush1.bf16.msra.mxu0 %v1308
    %1928 = vmatprep.subr.bf16.mxu0 %v1313
    %1929 = vmatpush1.bf16.msra.mxu0 %v1312
    %1930 = vmatprep.subr.bf16.mxu0 %v1317
    %1931 = vmatpush1.bf16.msra.mxu0 %v1316
    %1932 = vmatprep.subr.bf16.mxu0 %v1321
    %1933 = vmatpush1.bf16.msra.mxu0 %v1320
    %1934 = vmatprep.subr.bf16.mxu0 %v1325
    %1935 = vmatpush1.bf16.msra.mxu0 %v1324
    %1936 = vmatprep.subr.bf16.mxu0 %v1329
    %1937 = vmatpush1.bf16.msra.mxu0 %v1328
    %1938 = vmatprep.subr.bf16.mxu0 %v1333
    %1939 = vmatpush1.bf16.msra.mxu0 %v1332
    %1940 = vmatprep.subr.bf16.mxu0 %v1337
    %1941 = vmatpush1.bf16.msra.mxu0 %v1336
    %1942 = vmatprep.subr.bf16.mxu0 %v1341
    %1943 = vmatpush1.bf16.msra.mxu0 %v1340
    %1944 = vmatprep.subr.bf16.mxu0 %v1345
    %1945 = vmatpush1.bf16.msra.mxu0 %v1344
    %1946 = vmatprep.subr.bf16.mxu0 %v1349
    %1947 = vmatpush1.bf16.msra.mxu0 %v1348
    %1948 = vmatprep.mubr.bf16.mxu0 %v379
    %1949 = vmatmul.mubr.bf16.gmra.mrb[0].mxu0 %v378
    %v1950 = vpop.f32.mrb[0].mxu0
    %v1951 = vadd.f32 %v1910, %v1950
    %v1952 = vpop.f32.mrb[0].mxu0
    %v1953 = vadd.f32 %v1912, %v1952
    %v1954 = vpop.f32.mrb[0].mxu0
    %v1955 = vpop.f32.mrb[0].mxu0
    %1956 = vdwg.mxu0
    %1957 = vmatprep.subr.bf16.mxu0 %v1353
    %1958 = vmatpush1.bf16.msra.mxu0 %v1352
    %1959 = vmatprep.subr.bf16.mxu0 %v1357
    %1960 = vmatpush1.bf16.msra.mxu0 %v1356
    %1961 = vmatprep.subr.bf16.mxu0 %v1361
    %1962 = vmatpush1.bf16.msra.mxu0 %v1360
    %1963 = vmatprep.subr.bf16.mxu0 %v1365
    %1964 = vmatpush1.bf16.msra.mxu0 %v1364
    %1965 = vmatprep.subr.bf16.mxu0 %v1369
    %1966 = vmatpush1.bf16.msra.mxu0 %v1368
    %1967 = vmatprep.subr.bf16.mxu0 %v1373
    %1968 = vmatpush1.bf16.msra.mxu0 %v1372
    %1969 = vmatprep.subr.bf16.mxu0 %v1377
    %1970 = vmatpush1.bf16.msra.mxu0 %v1376
    %1971 = vmatprep.subr.bf16.mxu0 %v1381
    %1972 = vmatpush1.bf16.msra.mxu0 %v1380
    %1973 = vmatprep.subr.bf16.mxu0 %v1385
    %1974 = vmatpush1.bf16.msra.mxu0 %v1384
    %1975 = vmatprep.subr.bf16.mxu0 %v1389
    %1976 = vmatpush1.bf16.msra.mxu0 %v1388
    %1977 = vmatprep.subr.bf16.mxu0 %v1393
    %1978 = vmatpush1.bf16.msra.mxu0 %v1392
    %1979 = vmatprep.subr.bf16.mxu0 %v1397
    %1980 = vmatpush1.bf16.msra.mxu0 %v1396
    %1981 = vmatprep.subr.bf16.mxu0 %v1401
    %1982 = vmatpush1.bf16.msra.mxu0 %v1400
    %1983 = vmatprep.subr.bf16.mxu0 %v1405
    %1984 = vmatpush1.bf16.msra.mxu0 %v1404
    %1985 = vmatprep.subr.bf16.mxu0 %v1409
    %1986 = vmatpush1.bf16.msra.mxu0 %v1408
    %1987 = vmatprep.subr.bf16.mxu0 %v1413
    %1988 = vmatpush1.bf16.msra.mxu0 %v1412
    %1989 = vmatprep.mubr.bf16.mxu0 %v381
    %1990 = vmatmul.mubr.bf16.gmra.mrb[0].mxu0 %v380
    %v1991 = vpop.f32.mrb[0].mxu0
    %v1992 = vadd.f32 %v1951, %v1991
    %v1993 = vpop.f32.mrb[0].mxu0
    %v1994 = vadd.f32 %v1953, %v1993
    %v1995 = vpop.f32.mrb[0].mxu0
    %v1996 = vpop.f32.mrb[0].mxu0
    %1997 = vdwg.mxu0
    %v1998 = vld [vmem:[%s6] sm:$0xf]
    %v1999 = vadd.f32 %v1998, 1e-05
    %v2000 = vrsqrt.pop %v1999
    %v2001 = vld [vmem:[%s5] sm:$0xf]
    %v2003 = vlaneseq
    %v2004 = vshrl.u32 %v2003, 7
    %v2005 = vsub.s32 0, %v2004
    %v2006 = vrot.slane %v2001, %v2005
    %v2007 = vlaneseq
    %v2008 = vshrl.u32 %v2007, 7
    %v2009 = vsub.s32 1, %v2008
    %v2010 = vrot.slane %v2001, %v2009
    %v2011 = vlaneseq
    %v2012 = vshrl.u32 %v2011, 7
    %v2013 = vsub.s32 2, %v2012
    %v2014 = vrot.slane %v2001, %v2013
    %v2015 = vlaneseq
    %v2016 = vshrl.u32 %v2015, 7
    %v2017 = vsub.s32 3, %v2016
    %v2018 = vrot.slane %v2001, %v2017
    %v2023 = vsub.f32 %v1828, %v2006
    %v2024 = vsub.f32 %v1830, %v2010
    %v2025 = vsub.f32 %v1992, %v2014
    %v2026 = vsub.f32 %v1994, %v2018
    %v2027 = vld [vmem:[%s3] sm:$0xf]
    %v2028 = vmul.f32 %v2027, %v2000
    %v2030 = vlaneseq
    %v2031 = vshrl.u32 %v2030, 7
    %v2032 = vsub.s32 0, %v2031
    %v2033 = vrot.slane %v2028, %v2032
    %v2034 = vlaneseq
    %v2035 = vshrl.u32 %v2034, 7
    %v2036 = vsub.s32 1, %v2035
    %v2037 = vrot.slane %v2028, %v2036
    %v2038 = vlaneseq
    %v2039 = vshrl.u32 %v2038, 7
    %v2040 = vsub.s32 2, %v2039
    %v2041 = vrot.slane %v2028, %v2040
    %v2042 = vlaneseq
    %v2043 = vshrl.u32 %v2042, 7
    %v2044 = vsub.s32 3, %v2043
    %v2045 = vrot.slane %v2028, %v2044
    %v2050 = vmul.f32 %v2023, %v2033
    %v2051 = vmul.f32 %v2024, %v2037
    %v2052 = vmul.f32 %v2025, %v2041
    %v2053 = vmul.f32 %v2026, %v2045
    %v2054 = vld [vmem:[%s4] sm:$0xf]
    %v2056 = vlaneseq
    %v2057 = vshrl.u32 %v2056, 7
    %v2058 = vsub.s32 0, %v2057
    %v2059 = vrot.slane %v2054, %v2058
    %v2060 = vlaneseq
    %v2061 = vshrl.u32 %v2060, 7
    %v2062 = vsub.s32 1, %v2061
    %v2063 = vrot.slane %v2054, %v2062
    %v2064 = vlaneseq
    %v2065 = vshrl.u32 %v2064, 7
    %v2066 = vsub.s32 2, %v2065
    %v2067 = vrot.slane %v2054, %v2066
    %v2068 = vlaneseq
    %v2069 = vshrl.u32 %v2068, 7
    %v2070 = vsub.s32 3, %v2069
    %v2071 = vrot.slane %v2054, %v2070
    %v2076 = vadd.f32 %v2050, %v2059
    %v2077 = vadd.f32 %v2051, %v2063
    %v2078 = vadd.f32 %v2052, %v2067
    %v2079 = vadd.f32 %v2053, %v2071
    %v2080 = vmax.f32 %v2076, 0.0
    %v2081 = vmax.f32 %v2077, 0.0
    %v2082 = vmax.f32 %v2078, 0.0
    %v2083 = vmax.f32 %v2079, 0.0
    %v2084 = vpack.c.bf16 %v2080, %v2080
    %v2085 = vpack.c.bf16 %v2081, %v2081
    %v2086 = vpack.c.bf16 %v2082, %v2082
    %v2087 = vpack.c.bf16 %v2083, %v2083
    %v2088 = vld [vmem:[#allocation5] sm:$0xff]
    %v2089 = vld [vmem:[#allocation5 + $0x8] sm:$0xff]
    %v2090 = vld [vmem:[#allocation5 + $0x10] sm:$0xff]
    %v2091 = vld [vmem:[#allocation5 + $0x18] sm:$0xff]
    %v2092 = vld [vmem:[#allocation5 + $0x20] sm:$0xff]
    %v2093 = vld [vmem:[#allocation5 + $0x28] sm:$0xff]
    %v2094 = vld [vmem:[#allocation5 + $0x30] sm:$0xff]
    %v2095 = vld [vmem:[#allocation5 + $0x38] sm:$0xff]
    %v2096 = vld [vmem:[#allocation5 + $0x40] sm:$0xff]
    %v2097 = vld [vmem:[#allocation5 + $0x48] sm:$0xff]
    %v2098 = vld [vmem:[#allocation5 + $0x50] sm:$0xff]
    %v2099 = vld [vmem:[#allocation5 + $0x58] sm:$0xff]
    %v2100 = vld [vmem:[#allocation5 + $0x60] sm:$0xff]
    %v2101 = vld [vmem:[#allocation5 + $0x68] sm:$0xff]
    %v2102 = vld [vmem:[#allocation5 + $0x70] sm:$0xff]
    %v2103 = vld [vmem:[#allocation5 + $0x78] sm:$0xff]
    %v2104 = vld [vmem:[#allocation5 + $0x80] sm:$0xff]
    %v2105 = vld [vmem:[#allocation5 + $0x88] sm:$0xff]
    %v2106 = vld [vmem:[#allocation5 + $0x90] sm:$0xff]
    %v2107 = vld [vmem:[#allocation5 + $0x98] sm:$0xff]
    %v2108 = vld [vmem:[#allocation5 + $0xa0] sm:$0xff]
    %v2109 = vld [vmem:[#allocation5 + $0xa8] sm:$0xff]
    %v2110 = vld [vmem:[#allocation5 + $0xb0] sm:$0xff]
    %v2111 = vld [vmem:[#allocation5 + $0xb8] sm:$0xff]
    %v2112 = vld [vmem:[#allocation5 + $0xc0] sm:$0xff]
    %v2113 = vld [vmem:[#allocation5 + $0xc8] sm:$0xff]
    %v2114 = vld [vmem:[#allocation5 + $0xd0] sm:$0xff]
    %v2115 = vld [vmem:[#allocation5 + $0xd8] sm:$0xff]
    %v2116 = vld [vmem:[#allocation5 + $0xe0] sm:$0xff]
    %v2117 = vld [vmem:[#allocation5 + $0xe8] sm:$0xff]
    %v2118 = vld [vmem:[#allocation5 + $0xf0] sm:$0xff]
    %v2119 = vld [vmem:[#allocation5 + $0xf8] sm:$0xff]
    %v2120 = vld [vmem:[#allocation5 + $0x100] sm:$0xff]
    %v2121 = vld [vmem:[#allocation5 + $0x108] sm:$0xff]
    %v2122 = vld [vmem:[#allocation5 + $0x110] sm:$0xff]
    %v2123 = vld [vmem:[#allocation5 + $0x118] sm:$0xff]
    %v2124 = vld [vmem:[#allocation5 + $0x120] sm:$0xff]
    %v2125 = vld [vmem:[#allocation5 + $0x128] sm:$0xff]
    %v2126 = vld [vmem:[#allocation5 + $0x130] sm:$0xff]
    %v2127 = vld [vmem:[#allocation5 + $0x138] sm:$0xff]
    %v2128 = vld [vmem:[#allocation5 + $0x140] sm:$0xff]
    %v2129 = vld [vmem:[#allocation5 + $0x148] sm:$0xff]
    %v2130 = vld [vmem:[#allocation5 + $0x150] sm:$0xff]
    %v2131 = vld [vmem:[#allocation5 + $0x158] sm:$0xff]
    %v2132 = vld [vmem:[#allocation5 + $0x160] sm:$0xff]
    %v2133 = vld [vmem:[#allocation5 + $0x168] sm:$0xff]
    %v2134 = vld [vmem:[#allocation5 + $0x170] sm:$0xff]
    %v2135 = vld [vmem:[#allocation5 + $0x178] sm:$0xff]
    %v2136 = vld [vmem:[#allocation5 + $0x180] sm:$0xff]
    %v2137 = vld [vmem:[#allocation5 + $0x188] sm:$0xff]
    %v2138 = vld [vmem:[#allocation5 + $0x190] sm:$0xff]
    %v2139 = vld [vmem:[#allocation5 + $0x198] sm:$0xff]
    %v2140 = vld [vmem:[#allocation5 + $0x1a0] sm:$0xff]
    %v2141 = vld [vmem:[#allocation5 + $0x1a8] sm:$0xff]
    %v2142 = vld [vmem:[#allocation5 + $0x1b0] sm:$0xff]
    %v2143 = vld [vmem:[#allocation5 + $0x1b8] sm:$0xff]
    %v2144 = vld [vmem:[#allocation5 + $0x1c0] sm:$0xff]
    %v2145 = vld [vmem:[#allocation5 + $0x1c8] sm:$0xff]
    %v2146 = vld [vmem:[#allocation5 + $0x1d0] sm:$0xff]
    %v2147 = vld [vmem:[#allocation5 + $0x1d8] sm:$0xff]
    %v2148 = vld [vmem:[#allocation5 + $0x1e0] sm:$0xff]
    %v2149 = vld [vmem:[#allocation5 + $0x1e8] sm:$0xff]
    %v2150 = vld [vmem:[#allocation5 + $0x1f0] sm:$0xff]
    %v2151 = vld [vmem:[#allocation5 + $0x1f8] sm:$0xff]
    %v2152 = vld [vmem:[%s8] sm:$0x3]
    %v2154 = vlaneseq
    %v2155 = vshrl.u32 %v2154, 7
    %v2156 = vsub.s32 0, %v2155
    %v2157 = vrot.slane %v2152, %v2156
    %v2158 = vlaneseq
    %v2159 = vshrl.u32 %v2158, 7
    %v2160 = vsub.s32 1, %v2159
    %v2161 = vrot.slane %v2152, %v2160
    %v2228 = vunpack.c.l.b16 %v2088
    %v2229 = vunpack.c.h.b16 %v2088
    %v2230 = vunpack.c.l.b16 %v2089
    %v2231 = vunpack.c.h.b16 %v2089
    %v2232 = vunpack.c.l.b16 %v2090
    %v2233 = vunpack.c.h.b16 %v2090
    %v2234 = vunpack.c.l.b16 %v2091
    %v2235 = vunpack.c.h.b16 %v2091
    %v2236 = vunpack.c.l.b16 %v2092
    %v2237 = vunpack.c.h.b16 %v2092
    %v2238 = vunpack.c.l.b16 %v2093
    %v2239 = vunpack.c.h.b16 %v2093
    %v2240 = vunpack.c.l.b16 %v2094
    %v2241 = vunpack.c.h.b16 %v2094
    %v2242 = vunpack.c.l.b16 %v2095
    %v2243 = vunpack.c.h.b16 %v2095
    %v2244 = vunpack.c.l.b16 %v2096
    %v2245 = vunpack.c.h.b16 %v2096
    %v2246 = vunpack.c.l.b16 %v2097
    %v2247 = vunpack.c.h.b16 %v2097
    %v2248 = vunpack.c.l.b16 %v2098
    %v2249 = vunpack.c.h.b16 %v2098
    %v2250 = vunpack.c.l.b16 %v2099
    %v2251 = vunpack.c.h.b16 %v2099
    %v2252 = vunpack.c.l.b16 %v2100
    %v2253 = vunpack.c.h.b16 %v2100
    %v2254 = vunpack.c.l.b16 %v2101
    %v2255 = vunpack.c.h.b16 %v2101
    %v2256 = vunpack.c.l.b16 %v2102
    %v2257 = vunpack.c.h.b16 %v2102
    %v2258 = vunpack.c.l.b16 %v2103
    %v2259 = vunpack.c.h.b16 %v2103
    %v2260 = vunpack.c.l.b16 %v2104
    %v2261 = vunpack.c.h.b16 %v2104
    %v2262 = vunpack.c.l.b16 %v2105
    %v2263 = vunpack.c.h.b16 %v2105
    %v2264 = vunpack.c.l.b16 %v2106
    %v2265 = vunpack.c.h.b16 %v2106
    %v2266 = vunpack.c.l.b16 %v2107
    %v2267 = vunpack.c.h.b16 %v2107
    %v2268 = vunpack.c.l.b16 %v2108
    %v2269 = vunpack.c.h.b16 %v2108
    %v2270 = vunpack.c.l.b16 %v2109
    %v2271 = vunpack.c.h.b16 %v2109
    %v2272 = vunpack.c.l.b16 %v2110
    %v2273 = vunpack.c.h.b16 %v2110
    %v2274 = vunpack.c.l.b16 %v2111
    %v2275 = vunpack.c.h.b16 %v2111
    %v2276 = vunpack.c.l.b16 %v2112
    %v2277 = vunpack.c.h.b16 %v2112
    %v2278 = vunpack.c.l.b16 %v2113
    %v2279 = vunpack.c.h.b16 %v2113
    %v2280 = vunpack.c.l.b16 %v2114
    %v2281 = vunpack.c.h.b16 %v2114
    %v2282 = vunpack.c.l.b16 %v2115
    %v2283 = vunpack.c.h.b16 %v2115
    %v2284 = vunpack.c.l.b16 %v2116
    %v2285 = vunpack.c.h.b16 %v2116
    %v2286 = vunpack.c.l.b16 %v2117
    %v2287 = vunpack.c.h.b16 %v2117
    %v2288 = vunpack.c.l.b16 %v2118
    %v2289 = vunpack.c.h.b16 %v2118
    %v2290 = vunpack.c.l.b16 %v2119
    %v2291 = vunpack.c.h.b16 %v2119
    %v2292 = vunpack.c.l.b16 %v2120
    %v2293 = vunpack.c.h.b16 %v2120
    %v2294 = vunpack.c.l.b16 %v2121
    %v2295 = vunpack.c.h.b16 %v2121
    %v2296 = vunpack.c.l.b16 %v2122
    %v2297 = vunpack.c.h.b16 %v2122
    %v2298 = vunpack.c.l.b16 %v2123
    %v2299 = vunpack.c.h.b16 %v2123
    %v2300 = vunpack.c.l.b16 %v2124
    %v2301 = vunpack.c.h.b16 %v2124
    %v2302 = vunpack.c.l.b16 %v2125
    %v2303 = vunpack.c.h.b16 %v2125
    %v2304 = vunpack.c.l.b16 %v2126
    %v2305 = vunpack.c.h.b16 %v2126
    %v2306 = vunpack.c.l.b16 %v2127
    %v2307 = vunpack.c.h.b16 %v2127
    %v2308 = vunpack.c.l.b16 %v2128
    %v2309 = vunpack.c.h.b16 %v2128
    %v2310 = vunpack.c.l.b16 %v2129
    %v2311 = vunpack.c.h.b16 %v2129
    %v2312 = vunpack.c.l.b16 %v2130
    %v2313 = vunpack.c.h.b16 %v2130
    %v2314 = vunpack.c.l.b16 %v2131
    %v2315 = vunpack.c.h.b16 %v2131
    %v2316 = vunpack.c.l.b16 %v2132
    %v2317 = vunpack.c.h.b16 %v2132
    %v2318 = vunpack.c.l.b16 %v2133
    %v2319 = vunpack.c.h.b16 %v2133
    %v2320 = vunpack.c.l.b16 %v2134
    %v2321 = vunpack.c.h.b16 %v2134
    %v2322 = vunpack.c.l.b16 %v2135
    %v2323 = vunpack.c.h.b16 %v2135
    %v2324 = vunpack.c.l.b16 %v2136
    %v2325 = vunpack.c.h.b16 %v2136
    %v2326 = vunpack.c.l.b16 %v2137
    %v2327 = vunpack.c.h.b16 %v2137
    %v2328 = vunpack.c.l.b16 %v2138
    %v2329 = vunpack.c.h.b16 %v2138
    %v2330 = vunpack.c.l.b16 %v2139
    %v2331 = vunpack.c.h.b16 %v2139
    %v2332 = vunpack.c.l.b16 %v2140
    %v2333 = vunpack.c.h.b16 %v2140
    %v2334 = vunpack.c.l.b16 %v2141
    %v2335 = vunpack.c.h.b16 %v2141
    %v2336 = vunpack.c.l.b16 %v2142
    %v2337 = vunpack.c.h.b16 %v2142
    %v2338 = vunpack.c.l.b16 %v2143
    %v2339 = vunpack.c.h.b16 %v2143
    %v2340 = vunpack.c.l.b16 %v2144
    %v2341 = vunpack.c.h.b16 %v2144
    %v2342 = vunpack.c.l.b16 %v2145
    %v2343 = vunpack.c.h.b16 %v2145
    %v2344 = vunpack.c.l.b16 %v2146
    %v2345 = vunpack.c.h.b16 %v2146
    %v2346 = vunpack.c.l.b16 %v2147
    %v2347 = vunpack.c.h.b16 %v2147
    %v2348 = vunpack.c.l.b16 %v2148
    %v2349 = vunpack.c.h.b16 %v2148
    %v2350 = vunpack.c.l.b16 %v2149
    %v2351 = vunpack.c.h.b16 %v2149
    %v2352 = vunpack.c.l.b16 %v2150
    %v2353 = vunpack.c.h.b16 %v2150
    %v2354 = vunpack.c.l.b16 %v2151
    %v2355 = vunpack.c.h.b16 %v2151
    %v2356 = vpack.c.b16 %v2230, %v2228
    %v2357 = vpack.c.b16 %v2231, %v2229
    %v2358 = vpack.c.b16 %v2234, %v2232
    %v2359 = vpack.c.b16 %v2235, %v2233
    %v2360 = vpack.c.b16 %v2238, %v2236
    %v2361 = vpack.c.b16 %v2239, %v2237
    %v2362 = vpack.c.b16 %v2242, %v2240
    %v2363 = vpack.c.b16 %v2243, %v2241
    %v2364 = vpack.c.b16 %v2246, %v2244
    %v2365 = vpack.c.b16 %v2247, %v2245
    %v2366 = vpack.c.b16 %v2250, %v2248
    %v2367 = vpack.c.b16 %v2251, %v2249
    %v2368 = vpack.c.b16 %v2254, %v2252
    %v2369 = vpack.c.b16 %v2255, %v2253
    %v2370 = vpack.c.b16 %v2258, %v2256
    %v2371 = vpack.c.b16 %v2259, %v2257
    %v2372 = vpack.c.b16 %v2262, %v2260
    %v2373 = vpack.c.b16 %v2263, %v2261
    %v2374 = vpack.c.b16 %v2266, %v2264
    %v2375 = vpack.c.b16 %v2267, %v2265
    %v2376 = vpack.c.b16 %v2270, %v2268
    %v2377 = vpack.c.b16 %v2271, %v2269
    %v2378 = vpack.c.b16 %v2274, %v2272
    %v2379 = vpack.c.b16 %v2275, %v2273
    %v2380 = vpack.c.b16 %v2278, %v2276
    %v2381 = vpack.c.b16 %v2279, %v2277
    %v2382 = vpack.c.b16 %v2282, %v2280
    %v2383 = vpack.c.b16 %v2283, %v2281
    %v2384 = vpack.c.b16 %v2286, %v2284
    %v2385 = vpack.c.b16 %v2287, %v2285
    %v2386 = vpack.c.b16 %v2290, %v2288
    %v2387 = vpack.c.b16 %v2291, %v2289
    %v2388 = vpack.c.b16 %v2294, %v2292
    %v2389 = vpack.c.b16 %v2295, %v2293
    %v2390 = vpack.c.b16 %v2298, %v2296
    %v2391 = vpack.c.b16 %v2299, %v2297
    %v2392 = vpack.c.b16 %v2302, %v2300
    %v2393 = vpack.c.b16 %v2303, %v2301
    %v2394 = vpack.c.b16 %v2306, %v2304
    %v2395 = vpack.c.b16 %v2307, %v2305
    %v2396 = vpack.c.b16 %v2310, %v2308
    %v2397 = vpack.c.b16 %v2311, %v2309
    %v2398 = vpack.c.b16 %v2314, %v2312
    %v2399 = vpack.c.b16 %v2315, %v2313
    %v2400 = vpack.c.b16 %v2318, %v2316
    %v2401 = vpack.c.b16 %v2319, %v2317
    %v2402 = vpack.c.b16 %v2322, %v2320
    %v2403 = vpack.c.b16 %v2323, %v2321
    %v2404 = vpack.c.b16 %v2326, %v2324
    %v2405 = vpack.c.b16 %v2327, %v2325
    %v2406 = vpack.c.b16 %v2330, %v2328
    %v2407 = vpack.c.b16 %v2331, %v2329
    %v2408 = vpack.c.b16 %v2334, %v2332
    %v2409 = vpack.c.b16 %v2335, %v2333
    %v2410 = vpack.c.b16 %v2338, %v2336
    %v2411 = vpack.c.b16 %v2339, %v2337
    %v2412 = vpack.c.b16 %v2342, %v2340
    %v2413 = vpack.c.b16 %v2343, %v2341
    %v2414 = vpack.c.b16 %v2346, %v2344
    %v2415 = vpack.c.b16 %v2347, %v2345
    %v2416 = vpack.c.b16 %v2350, %v2348
    %v2417 = vpack.c.b16 %v2351, %v2349
    %v2418 = vpack.c.b16 %v2354, %v2352
    %v2419 = vpack.c.b16 %v2355, %v2353
    %2484 = vmatprep.subr.bf16.mxu0 %v2357
    %2485 = vmatpush1.bf16.msra.mxu0 %v2356
    %2486 = vmatprep.subr.bf16.mxu0 %v2359
    %2487 = vmatpush1.bf16.msra.mxu0 %v2358
    %2488 = vmatprep.subr.bf16.mxu0 %v2361
    %2489 = vmatpush1.bf16.msra.mxu0 %v2360
    %2490 = vmatprep.subr.bf16.mxu0 %v2363
    %2491 = vmatpush1.bf16.msra.mxu0 %v2362
    %2492 = vmatprep.subr.bf16.mxu0 %v2365
    %2493 = vmatpush1.bf16.msra.mxu0 %v2364
    %2494 = vmatprep.subr.bf16.mxu0 %v2367
    %2495 = vmatpush1.bf16.msra.mxu0 %v2366
    %2496 = vmatprep.subr.bf16.mxu0 %v2369
    %2497 = vmatpush1.bf16.msra.mxu0 %v2368
    %2498 = vmatprep.subr.bf16.mxu0 %v2371
    %2499 = vmatpush1.bf16.msra.mxu0 %v2370
    %2500 = vmatprep.subr.bf16.mxu0 %v2373
    %2501 = vmatpush1.bf16.msra.mxu0 %v2372
    %2502 = vmatprep.subr.bf16.mxu0 %v2375
    %2503 = vmatpush1.bf16.msra.mxu0 %v2374
    %2504 = vmatprep.subr.bf16.mxu0 %v2377
    %2505 = vmatpush1.bf16.msra.mxu0 %v2376
    %2506 = vmatprep.subr.bf16.mxu0 %v2379
    %2507 = vmatpush1.bf16.msra.mxu0 %v2378
    %2508 = vmatprep.subr.bf16.mxu0 %v2381
    %2509 = vmatpush1.bf16.msra.mxu0 %v2380
    %2510 = vmatprep.subr.bf16.mxu0 %v2383
    %2511 = vmatpush1.bf16.msra.mxu0 %v2382
    %2512 = vmatprep.subr.bf16.mxu0 %v2385
    %2513 = vmatpush1.bf16.msra.mxu0 %v2384
    %2514 = vmatprep.subr.bf16.mxu0 %v2387
    %2515 = vmatpush1.bf16.msra.mxu0 %v2386
    %2516 = vmatprep.mubr.bf16.mxu0 %v2085
    %2517 = vmatmul.mubr.bf16.gmra.mrb[0].mxu0 %v2084
    %v2518 = vpop.f32.mrb[0].mxu0
    %v2519 = vadd.f32 %v2157, %v2518
    %v2520 = vpop.f32.mrb[0].mxu0
    %v2521 = vadd.f32 %v2161, %v2520
    %v2522 = vpop.f32.mrb[0].mxu0
    %v2523 = vpop.f32.mrb[0].mxu0
    %2524 = vdwg.mxu0
    %2525 = vmatprep.subr.bf16.mxu0 %v2389
    %2526 = vmatpush1.bf16.msra.mxu0 %v2388
    %2527 = vmatprep.subr.bf16.mxu0 %v2391
    %2528 = vmatpush1.bf16.msra.mxu0 %v2390
    %2529 = vmatprep.subr.bf16.mxu0 %v2393
    %2530 = vmatpush1.bf16.msra.mxu0 %v2392
    %2531 = vmatprep.subr.bf16.mxu0 %v2395
    %2532 = vmatpush1.bf16.msra.mxu0 %v2394
    %2533 = vmatprep.subr.bf16.mxu0 %v2397
    %2534 = vmatpush1.bf16.msra.mxu0 %v2396
    %2535 = vmatprep.subr.bf16.mxu0 %v2399
    %2536 = vmatpush1.bf16.msra.mxu0 %v2398
    %2537 = vmatprep.subr.bf16.mxu0 %v2401
    %2538 = vmatpush1.bf16.msra.mxu0 %v2400
    %2539 = vmatprep.subr.bf16.mxu0 %v2403
    %2540 = vmatpush1.bf16.msra.mxu0 %v2402
    %2541 = vmatprep.subr.bf16.mxu0 %v2405
    %2542 = vmatpush1.bf16.msra.mxu0 %v2404
    %2543 = vmatprep.subr.bf16.mxu0 %v2407
    %2544 = vmatpush1.bf16.msra.mxu0 %v2406
    %2545 = vmatprep.subr.bf16.mxu0 %v2409
    %2546 = vmatpush1.bf16.msra.mxu0 %v2408
    %2547 = vmatprep.subr.bf16.mxu0 %v2411
    %2548 = vmatpush1.bf16.msra.mxu0 %v2410
    %2549 = vmatprep.subr.bf16.mxu0 %v2413
    %2550 = vmatpush1.bf16.msra.mxu0 %v2412
    %2551 = vmatprep.subr.bf16.mxu0 %v2415
    %2552 = vmatpush1.bf16.msra.mxu0 %v2414
    %2553 = vmatprep.subr.bf16.mxu0 %v2417
    %2554 = vmatpush1.bf16.msra.mxu0 %v2416
    %2555 = vmatprep.subr.bf16.mxu0 %v2419
    %2556 = vmatpush1.bf16.msra.mxu0 %v2418
    %2557 = vmatprep.mubr.bf16.mxu0 %v2087
    %2558 = vmatmul.mubr.bf16.gmra.mrb[0].mxu0 %v2086
    %v2559 = vpop.f32.mrb[0].mxu0
    %v2560 = vadd.f32 %v2519, %v2559
    %v2561 = vpop.f32.mrb[0].mxu0
    %v2562 = vadd.f32 %v2521, %v2561
    %v2563 = vpop.f32.mrb[0].mxu0
    %v2564 = vpop.f32.mrb[0].mxu0
    %2565 = vdwg.mxu0
    %v2566 = vld [vmem:[%s12] sm:$0x3]
    %v2567 = vadd.f32 %v2566, 1e-05
    %v2568 = vrsqrt.pop %v2567
    %v2569 = vld [vmem:[%s11] sm:$0x3]
    %v2571 = vlaneseq
    %v2572 = vshrl.u32 %v2571, 7
    %v2573 = vsub.s32 0, %v2572
    %v2574 = vrot.slane %v2569, %v2573
    %v2575 = vlaneseq
    %v2576 = vshrl.u32 %v2575, 7
    %v2577 = vsub.s32 1, %v2576
    %v2578 = vrot.slane %v2569, %v2577
    %v2581 = vsub.f32 %v2560, %v2574
    %v2582 = vsub.f32 %v2562, %v2578
    %v2583 = vld [vmem:[%s9] sm:$0x3]
    %v2584 = vmul.f32 %v2583, %v2568
    %v2586 = vlaneseq
    %v2587 = vshrl.u32 %v2586, 7
    %v2588 = vsub.s32 0, %v2587
    %v2589 = vrot.slane %v2584, %v2588
    %v2590 = vlaneseq
    %v2591 = vshrl.u32 %v2590, 7
    %v2592 = vsub.s32 1, %v2591
    %v2593 = vrot.slane %v2584, %v2592
    %v2596 = vmul.f32 %v2581, %v2589
    %v2597 = vmul.f32 %v2582, %v2593
    %v2598 = vld [vmem:[%s10] sm:$0x3]
    %v2600 = vlaneseq
    %v2601 = vshrl.u32 %v2600, 7
    %v2602 = vsub.s32 0, %v2601
    %v2603 = vrot.slane %v2598, %v2602
    %v2604 = vlaneseq
    %v2605 = vshrl.u32 %v2604, 7
    %v2606 = vsub.s32 1, %v2605
    %v2607 = vrot.slane %v2598, %v2606
    %v2610 = vadd.f32 %v2596, %v2603
    %v2611 = vadd.f32 %v2597, %v2607
    %v2612 = vmax.f32 %v2610, 0.0
    %v2613 = vmax.f32 %v2611, 0.0
    %v2614 = vpack.c.bf16 %v2612, %v2612
    %v2615 = vpack.c.bf16 %v2613, %v2613
    %v2616 = vld [vmem:[%s13] sm:$0xf]
    %v2617 = vld [vmem:[%s13 + $0x4] sm:$0xf]
    %v2618 = vld [vmem:[%s13 + $0x8] sm:$0xf]
    %v2619 = vld [vmem:[%s13 + $0xc] sm:$0xf]
    %v2620 = vld [vmem:[%s13 + $0x10] sm:$0xf]
    %v2621 = vld [vmem:[%s13 + $0x14] sm:$0xf]
    %v2622 = vld [vmem:[%s13 + $0x18] sm:$0xf]
    %v2623 = vld [vmem:[%s13 + $0x1c] sm:$0xf]
    %v2624 = vld [vmem:[%s13 + $0x20] sm:$0xf]
    %v2625 = vld [vmem:[%s13 + $0x24] sm:$0xf]
    %v2626 = vld [vmem:[%s13 + $0x28] sm:$0xf]
    %v2627 = vld [vmem:[%s13 + $0x2c] sm:$0xf]
    %v2628 = vld [vmem:[%s13 + $0x30] sm:$0xf]
    %v2629 = vld [vmem:[%s13 + $0x34] sm:$0xf]
    %v2630 = vld [vmem:[%s13 + $0x38] sm:$0xf]
    %v2631 = vld [vmem:[%s13 + $0x3c] sm:$0xf]
    %v2632 = vld [vmem:[%s13 + $0x40] sm:$0xf]
    %v2633 = vld [vmem:[%s13 + $0x44] sm:$0xf]
    %v2634 = vld [vmem:[%s13 + $0x48] sm:$0xf]
    %v2635 = vld [vmem:[%s13 + $0x4c] sm:$0xf]
    %v2636 = vld [vmem:[%s13 + $0x50] sm:$0xf]
    %v2637 = vld [vmem:[%s13 + $0x54] sm:$0xf]
    %v2638 = vld [vmem:[%s13 + $0x58] sm:$0xf]
    %v2639 = vld [vmem:[%s13 + $0x5c] sm:$0xf]
    %v2640 = vld [vmem:[%s13 + $0x60] sm:$0xf]
    %v2641 = vld [vmem:[%s13 + $0x64] sm:$0xf]
    %v2642 = vld [vmem:[%s13 + $0x68] sm:$0xf]
    %v2643 = vld [vmem:[%s13 + $0x6c] sm:$0xf]
    %v2644 = vld [vmem:[%s13 + $0x70] sm:$0xf]
    %v2645 = vld [vmem:[%s13 + $0x74] sm:$0xf]
    %v2646 = vld [vmem:[%s13 + $0x78] sm:$0xf]
    %v2647 = vld [vmem:[%s13 + $0x7c] sm:$0xf]
    %v2648 = vld [vmem:[%s14] sm:$0x1]
    %v2650 = vlaneseq
    %v2651 = vshrl.u32 %v2650, 7
    %v2652 = vsub.s32 0, %v2651
    %v2653 = vrot.slane %v2648, %v2652
    %v2687 = vunpack.c.l.b16 %v2616
    %v2688 = vunpack.c.l.b16 %v2617
    %v2689 = vunpack.c.l.b16 %v2618
    %v2690 = vunpack.c.l.b16 %v2619
    %v2691 = vunpack.c.l.b16 %v2620
    %v2692 = vunpack.c.l.b16 %v2621
    %v2693 = vunpack.c.l.b16 %v2622
    %v2694 = vunpack.c.l.b16 %v2623
    %v2695 = vunpack.c.l.b16 %v2624
    %v2696 = vunpack.c.l.b16 %v2625
    %v2697 = vunpack.c.l.b16 %v2626
    %v2698 = vunpack.c.l.b16 %v2627
    %v2699 = vunpack.c.l.b16 %v2628
    %v2700 = vunpack.c.l.b16 %v2629
    %v2701 = vunpack.c.l.b16 %v2630
    %v2702 = vunpack.c.l.b16 %v2631
    %v2703 = vunpack.c.l.b16 %v2632
    %v2704 = vunpack.c.l.b16 %v2633
    %v2705 = vunpack.c.l.b16 %v2634
    %v2706 = vunpack.c.l.b16 %v2635
    %v2707 = vunpack.c.l.b16 %v2636
    %v2708 = vunpack.c.l.b16 %v2637
    %v2709 = vunpack.c.l.b16 %v2638
    %v2710 = vunpack.c.l.b16 %v2639
    %v2711 = vunpack.c.l.b16 %v2640
    %v2712 = vunpack.c.l.b16 %v2641
    %v2713 = vunpack.c.l.b16 %v2642
    %v2714 = vunpack.c.l.b16 %v2643
    %v2715 = vunpack.c.l.b16 %v2644
    %v2716 = vunpack.c.l.b16 %v2645
    %v2717 = vunpack.c.l.b16 %v2646
    %v2718 = vunpack.c.l.b16 %v2647
    %v2719 = vpack.c.b16 %v2688, %v2687
    %v2720 = vpack.c.b16 %v2690, %v2689
    %v2721 = vpack.c.b16 %v2692, %v2691
    %v2722 = vpack.c.b16 %v2694, %v2693
    %v2723 = vpack.c.b16 %v2696, %v2695
    %v2724 = vpack.c.b16 %v2698, %v2697
    %v2725 = vpack.c.b16 %v2700, %v2699
    %v2726 = vpack.c.b16 %v2702, %v2701
    %v2727 = vpack.c.b16 %v2704, %v2703
    %v2728 = vpack.c.b16 %v2706, %v2705
    %v2729 = vpack.c.b16 %v2708, %v2707
    %v2730 = vpack.c.b16 %v2710, %v2709
    %v2731 = vpack.c.b16 %v2712, %v2711
    %v2732 = vpack.c.b16 %v2714, %v2713
    %v2733 = vpack.c.b16 %v2716, %v2715
    %v2734 = vpack.c.b16 %v2718, %v2717
    %2751 = vmatprep.subr.bf16.mxu0 0
    %2752 = vmatpush1.bf16.msra.mxu0 %v2719
    %2753 = vmatprep.subr.bf16.mxu0 0
    %2754 = vmatpush1.bf16.msra.mxu0 %v2720
    %2755 = vmatprep.subr.bf16.mxu0 0
    %2756 = vmatpush1.bf16.msra.mxu0 %v2721
    %2757 = vmatprep.subr.bf16.mxu0 0
    %2758 = vmatpush1.bf16.msra.mxu0 %v2722
    %2759 = vmatprep.subr.bf16.mxu0 0
    %2760 = vmatpush1.bf16.msra.mxu0 %v2723
    %2761 = vmatprep.subr.bf16.mxu0 0
    %2762 = vmatpush1.bf16.msra.mxu0 %v2724
    %2763 = vmatprep.subr.bf16.mxu0 0
    %2764 = vmatpush1.bf16.msra.mxu0 %v2725
    %2765 = vmatprep.subr.bf16.mxu0 0
    %2766 = vmatpush1.bf16.msra.mxu0 %v2726
    %2767 = vmatprep.subr.bf16.mxu0 0
    %2768 = vmatpush1.bf16.msra.mxu0 %v2727
    %2769 = vmatprep.subr.bf16.mxu0 0
    %2770 = vmatpush1.bf16.msra.mxu0 %v2728
    %2771 = vmatprep.subr.bf16.mxu0 0
    %2772 = vmatpush1.bf16.msra.mxu0 %v2729
    %2773 = vmatprep.subr.bf16.mxu0 0
    %2774 = vmatpush1.bf16.msra.mxu0 %v2730
    %2775 = vmatprep.subr.bf16.mxu0 0
    %2776 = vmatpush1.bf16.msra.mxu0 %v2731
    %2777 = vmatprep.subr.bf16.mxu0 0
    %2778 = vmatpush1.bf16.msra.mxu0 %v2732
    %2779 = vmatprep.subr.bf16.mxu0 0
    %2780 = vmatpush1.bf16.msra.mxu0 %v2733
    %2781 = vmatprep.subr.bf16.mxu0 0
    %2782 = vmatpush1.bf16.msra.mxu0 %v2734
    %2783 = vmatprep.mubr.bf16.mxu0 %v2615
    %2784 = vmatmul.mubr.bf16.gmra.mrb[0].mxu0 %v2614
    %v2785 = vpop.f32.mrb[0].mxu0
    %v2786 = vadd.f32 %v2653, %v2785
    %v2787 = vpop.f32.mrb[0].mxu0
    %v2788 = vpop.f32.mrb[0].mxu0
    %v2789 = vpop.f32.mrb[0].mxu0
    %2790 = vdwg.mxu0
    %vm2791 = vcmask 130048
    %v2792 = vsel %vm2791, %v2786, -inf
    %2793 = vmax.xlane.f32.xlu0 %v2792
    %v2794 = vpop.xlane.xlu0 %2793
    %v2795 = vsub.f32 %v2786, %v2794
    %v2796 = vmul.f32 %v2795, 1.442695
    %v2797 = vpow.pop %v2796
    %v2798 = vsel %vm2791, %v2797, 0.0
    %2799 = vadd.xlane.f32.xlu0 %v2798
    %v2800 = vpop.xlane.xlu0 %2799
    %v2801 = vlog2.pop %v2800
    %v2802 = vmul.f32 %v2801, 0.6931472
    %v2803 = vadd.f32 %v2802, %v2794
    %v2804 = vsub.f32 %v2786, %v2803
    %2805 = vst.msk [vmem:[#allocation7] sm:$0xff] %vm2791, %v2804
    // Predicated region
    $region70: #{tpu_custom_call.1} parent=1 // pred_check
      _
    $region71: #{tpu_custom_call.1} parent=1 // pred_check_branch
      %2807 = sbr.rel (0) target = $region73
    $region72: #{tpu_custom_call.1} parent=1 // pred_region
      %s2809 = ssub.s32 128, 128
      %2810 = vsyncadd [#allocation4], %s2809
      %s2812 = sshll.u32 [#allocation7], 4
      %s2813 = int_to_ptr.vmem [resolvable:$true] %s2812
      %2815 = dma.vmem_to_hbm [thread:$0]  %s2813, 128, %s15, [#allocation4]
    $region73: #{tpu_custom_call.1} parent=1 // pred_fallthru
      _
    // Predicated region
    $region74: #{tpu_custom_call.1} parent=1 // pred_check
      _
    $region75: #{tpu_custom_call.1} parent=1 // pred_check_branch
      %2817 = sbr.rel (0) target = $region77
    $region76: #{tpu_custom_call.1} parent=1 // pred_region
      %2818 = dma.done [#allocation4], 128
    $region77: #{tpu_custom_call.1} parent=1 // pred_fallthru
      _
    %2819 = vsyncpa [#allocation3], 1
    %2820 = vsyncpa [#allocation6], 1
    %2821 = vsyncpa [#allocation4], 1

</llo_original>
